<compile_context>
chip_gen: v7x
topology: tpu7x:2x2x1
jax: 0.10.0
libtpu: 0.0.40
codegen_flags: <defaults>
</compile_context>

<pallas_src>
import numpy as np

import jax
import jax.numpy as jnp
from jax.experimental import pallas as pl
from jax.experimental.pallas import tpu as pltpu

NZ, NGF, NDF, NC = 8, 8, 8, 1   # small DCGAN sizes
BN_EPS = 1e-5
IN_PAD = 128                    # latent dim padded to a lane-dense K
OUT_PAD = 128                   # final Cout=1 padded to a lane-dense N


# ----------------------------------------------------------------------------
# Fused Pallas kernel: 6 x (matmul + bias + activation), everything resident.
# ----------------------------------------------------------------------------
def _act(acc, act):
    if act == "relu":
        return jnp.maximum(acc, 0.0)
    if act == "lrelu":
        return jnp.where(acc >= 0.0, acc, 0.2 * acc)
    if act == "tanh":
        return jnp.tanh(acc)
    if act == "sigmoid":
        # exp + approx reciprocal both go to the (otherwise idle) EUP slot;
        # clip keeps the strict [0, 1] range despite the approximate rcp.
        s = pl.reciprocal(1.0 + jnp.exp(-acc), approx=True)
        return jnp.clip(s, 0.0, 1.0)
    return acc


def _gan_fused_kernel(x_ref,
                      w1, b1, w2, b2, w3, b3, w4, b4, w5, b5, w6, b6,
                      o_ref):
    def layer(h, w_ref, b_ref, act):
        acc = jnp.dot(h.astype(jnp.bfloat16), w_ref[...],
                      preferred_element_type=jnp.float32)   # bf16 MXU, f32 acc
        acc = acc + b_ref[...]                               # (1, N) broadcast
        return _act(acc, act)

    h = x_ref[...]                       # (B, 128) f32, zero-padded latent
    h = layer(h, w1, b1, "relu")         # g1: 1x1    -> 4x4x16   (N=256)
    h = layer(h, w2, b2, "relu")         # g2: 4x4    -> 8x8x8    (N=512)
    h = layer(h, w3, b3, "tanh")         # g3: 8x8    -> 16x16x1  (N=256) image
    h = layer(h, w4, b4, "lrelu")        # d1: 16x16  -> 8x8x8    (N=512)
    h = layer(h, w5, b5, "lrelu")        # d2: 8x8    -> 4x4x16   (N=256)
    h = layer(h, w6, b6, "sigmoid")      # d3: 4x4    -> 1 (padded to N=128)
    o_ref[...] = h.astype(o_ref.dtype)


@jax.jit
def gan_forward(params, x):
    """x: (B, NZ, 1, 1) latent -> (B, 1, 1, 1) discriminator probability."""
    B = x.shape[0]
    x2 = jnp.pad(x.reshape(B, NZ).astype(jnp.float32),
                 ((0, 0), (0, IN_PAD - NZ)))                 # lane-dense K=128
    ws, bs = params["ws"], params["bs"]

    flat_args = [x2]
    in_specs = [pl.BlockSpec(x2.shape, lambda i: (0, 0))]
    for w, b in zip(ws, bs):
        flat_args += [w, b]
        in_specs += [pl.BlockSpec(w.shape, lambda i: (0, 0)),
                     pl.BlockSpec(b.shape, lambda i: (0, 0))]

    out = pl.pallas_call(
        _gan_fused_kernel,
        out_shape=jax.ShapeDtypeStruct((B, OUT_PAD), jnp.float32),
        grid=(1,),
        in_specs=in_specs,
        out_specs=pl.BlockSpec((B, OUT_PAD), lambda i: (0, 0)),
        compiler_params=pltpu.CompilerParams(
            dimension_semantics=("arbitrary",),
            vmem_limit_bytes=32 * 1024 * 1024,   # actual use ~2 MB; safe on v7x
        ),
    )(*flat_args)
    return out[:, :1].reshape(B, 1, 1, 1)


# ----------------------------------------------------------------------------
# Init-time lowering: each conv -> dense unrolled matrix over NHWC-flat vectors.
# (Pure numpy, runs once; the forward pass itself is a single Pallas kernel.)
# ----------------------------------------------------------------------------
def _conv_dense(w, b, Hin, Win, stride, pad):
    """PyTorch Conv2d -> dense (Hin*Win*Cin, Hout*Wout*Cout) matrix (NHWC-flat)."""
    Cout, Cin, kh, kw = w.shape
    Hout = (Hin + 2 * pad - kh) // stride + 1
    Wout = (Win + 2 * pad - kw) // stride + 1
    M = np.zeros((Hin * Win * Cin, Hout * Wout * Cout), np.float32)
    for ho in range(Hout):
        for wo in range(Wout):
            ob = (ho * Wout + wo) * Cout
            for ki in range(kh):
                hi = ho * stride - pad + ki
                if not (0 <= hi < Hin):
                    continue
                for kj in range(kw):
                    wi = wo * stride - pad + kj
                    if not (0 <= wi < Win):
                        continue
                    for ci in range(Cin):
                        M[(hi * Win + wi) * Cin + ci, ob:ob + Cout] += w[:, ci, ki, kj]
    return M, np.tile(b, Hout * Wout), Hout, Wout


def _convT_dense(w, b, Hin, Win, stride, pad):
    """PyTorch ConvTranspose2d -> dense matrix (NHWC-flat)."""
    Cin, Cout, kh, kw = w.shape
    Hout = (Hin - 1) * stride - 2 * pad + kh
    Wout = (Win - 1) * stride - 2 * pad + kw
    M = np.zeros((Hin * Win * Cin, Hout * Wout * Cout), np.float32)
    for hi in range(Hin):
        for wi in range(Win):
            for ki in range(kh):
                ho = hi * stride - pad + ki
                if not (0 <= ho < Hout):
                    continue
                for kj in range(kw):
                    wo = wi * stride - pad + kj
                    if not (0 <= wo < Wout):
                        continue
                    ob = (ho * Wout + wo) * Cout
                    for ci in range(Cin):
                        M[(hi * Win + wi) * Cin + ci, ob:ob + Cout] += w[ci, :, ki, kj]
    return M, np.tile(b, Hout * Wout), Hout, Wout


# TODO(synk): BatchNorm is implemented in eval mode (running stats folded into
# an affine scale/shift on the adjacent conv); train-mode batch statistics of
# the PyTorch reference are not reproduced.
def _fold_bn(w, b, gamma, beta, mean, var, out_axis):
    scale = gamma / np.sqrt(var + BN_EPS)
    shift = beta - scale * mean
    shape = [1] * w.ndim
    shape[out_axis] = -1
    return w * scale.reshape(shape), scale * b + shift


def init_params(key):
    ks = jax.random.split(key, 12)

    def rnd(k, shape, s):
        return np.asarray(s * jax.random.normal(k, shape, jnp.float32))

    # Generator (ConvTranspose weights are (Cin, Cout, k, k))
    g1_w = rnd(ks[0], (NZ, 2 * NGF, 4, 4), 0.05);  g1_b = rnd(ks[1], (2 * NGF,), 0.01)
    g2_w = rnd(ks[2], (2 * NGF, NGF, 4, 4), 0.05); g2_b = rnd(ks[3], (NGF,), 0.01)
    g3_w = rnd(ks[4], (NGF, NC, 4, 4), 0.05);      g3_b = rnd(ks[5], (NC,), 0.01)
    # Discriminator (Conv weights are (Cout, Cin, k, k))
    d1_w = rnd(ks[6], (NDF, NC, 4, 4), 0.05);      d1_b = rnd(ks[7], (NDF,), 0.01)
    d2_w = rnd(ks[8], (2 * NDF, NDF, 4, 4), 0.05); d2_b = rnd(ks[9], (2 * NDF,), 0.01)
    d3_w = rnd(ks[10], (1, 2 * NDF, 4, 4), 0.05);  d3_b = rnd(ks[11], (1,), 0.01)

    def bn_default(c):
        return (np.ones(c, np.float32), np.zeros(c, np.float32),
                np.zeros(c, np.float32), np.ones(c, np.float32))

    # Eval-mode BN (default running stats) folded into the adjacent conv.
    g1_w, g1_b = _fold_bn(g1_w, g1_b, *bn_default(2 * NGF), out_axis=1)
    g2_w, g2_b = _fold_bn(g2_w, g2_b, *bn_default(NGF), out_axis=1)
    d2_w, d2_b = _fold_bn(d2_w, d2_b, *bn_default(2 * NDF), out_axis=0)

    mats, biases = [], []
    H = W = 1
    m, bf, H, W = _convT_dense(g1_w, g1_b, H, W, stride=1, pad=0); mats.append(m); biases.append(bf)  # 4x4
    m, bf, H, W = _convT_dense(g2_w, g2_b, H, W, stride=2, pad=1); mats.append(m); biases.append(bf)  # 8x8
    m, bf, H, W = _convT_dense(g3_w, g3_b, H, W, stride=2, pad=1); mats.append(m); biases.append(bf)  # 16x16
    m, bf, H, W = _conv_dense(d1_w, d1_b, H, W, stride=2, pad=1);  mats.append(m); biases.append(bf)  # 8x8
    m, bf, H, W = _conv_dense(d2_w, d2_b, H, W, stride=2, pad=1);  mats.append(m); biases.append(bf)  # 4x4
    m, bf, H, W = _conv_dense(d3_w, d3_b, H, W, stride=1, pad=0);  mats.append(m); biases.append(bf)  # 1x1

    # Pad latent K (first matrix rows) and final N (last matrix cols) to 128
    # so every matmul operand / HBM store is lane-dense.
    m1 = np.zeros((IN_PAD, mats[0].shape[1]), np.float32); m1[:NZ] = mats[0]
    mats[0] = m1
    m6 = np.zeros((mats[-1].shape[0], OUT_PAD), np.float32); m6[:, :1] = mats[-1]
    b6 = np.zeros((OUT_PAD,), np.float32); b6[:1] = biases[-1]
    mats[-1], biases[-1] = m6, b6

    ws = [jnp.asarray(m, jnp.bfloat16) for m in mats]            # bf16 MXU inputs
    bs = [jnp.asarray(bf.reshape(1, -1), jnp.float32) for bf in biases]  # f32 bias
    return {"ws": ws, "bs": bs}


if __name__ == "__main__":
    key = jax.random.PRNGKey(0)
    k_param, k_x = jax.random.split(key)
    params = init_params(k_param)
    x = jax.random.normal(k_x, (2, NZ, 1, 1), jnp.float32)   # latent noise

    out = gan_forward(params, x)
    out = jax.block_until_ready(out)

    assert out.shape == (2, 1, 1, 1), out.shape
    assert bool(jnp.all((out >= 0.0) & (out <= 1.0))), "sigmoid range violated"
    assert bool(jnp.all(jnp.isfinite(out))), "non-finite output"
    print("KERNEL_OK")
</pallas_src>

<mosaic_0001>
module attributes {stable_mosaic.version = 11 : i64} {
  func.func @_gan_fused_kernel(%arg0: i32, %arg1: memref<2x128xf32, #tpu.memory_space<vmem>>, %arg2: memref<128x256xbf16, #tpu.memory_space<vmem>>, %arg3: memref<1x256xf32, #tpu.memory_space<vmem>>, %arg4: memref<256x512xbf16, #tpu.memory_space<vmem>>, %arg5: memref<1x512xf32, #tpu.memory_space<vmem>>, %arg6: memref<512x256xbf16, #tpu.memory_space<vmem>>, %arg7: memref<1x256xf32, #tpu.memory_space<vmem>>, %arg8: memref<256x512xbf16, #tpu.memory_space<vmem>>, %arg9: memref<1x512xf32, #tpu.memory_space<vmem>>, %arg10: memref<512x256xbf16, #tpu.memory_space<vmem>>, %arg11: memref<1x256xf32, #tpu.memory_space<vmem>>, %arg12: memref<256x128xbf16, #tpu.memory_space<vmem>>, %arg13: memref<1x128xf32, #tpu.memory_space<vmem>>, %arg14: memref<2x128xf32, #tpu.memory_space<vmem>>) attributes {dimension_semantics = [#tpu.dimension_semantics<arbitrary>], iteration_bounds = array<i64: 1>, scalar_prefetch = 0 : i64, scratch_operands = 0 : i64, tpu.core_type = #tpu.core_type<tc>, window_params = [{pipeline_mode = #tpu.pipeline_mode<synchronous>, transform_indices = @transform_0, window_bounds = array<i64: 2, 128>}, {pipeline_mode = #tpu.pipeline_mode<synchronous>, transform_indices = @transform_1, window_bounds = array<i64: 128, 256>}, {pipeline_mode = #tpu.pipeline_mode<synchronous>, transform_indices = @transform_2, window_bounds = array<i64: 1, 256>}, {pipeline_mode = #tpu.pipeline_mode<synchronous>, transform_indices = @transform_3, window_bounds = array<i64: 256, 512>}, {pipeline_mode = #tpu.pipeline_mode<synchronous>, transform_indices = @transform_4, window_bounds = array<i64: 1, 512>}, {pipeline_mode = #tpu.pipeline_mode<synchronous>, transform_indices = @transform_5, window_bounds = array<i64: 512, 256>}, {pipeline_mode = #tpu.pipeline_mode<synchronous>, transform_indices = @transform_6, window_bounds = array<i64: 1, 256>}, {pipeline_mode = #tpu.pipeline_mode<synchronous>, transform_indices = @transform_7, window_bounds = array<i64: 256, 512>}, {pipeline_mode = #tpu.pipeline_mode<synchronous>, transform_indices = @transform_8, window_bounds = array<i64: 1, 512>}, {pipeline_mode = #tpu.pipeline_mode<synchronous>, transform_indices = @transform_9, window_bounds = array<i64: 512, 256>}, {pipeline_mode = #tpu.pipeline_mode<synchronous>, transform_indices = @transform_10, window_bounds = array<i64: 1, 256>}, {pipeline_mode = #tpu.pipeline_mode<synchronous>, transform_indices = @transform_11, window_bounds = array<i64: 256, 128>}, {pipeline_mode = #tpu.pipeline_mode<synchronous>, transform_indices = @transform_12, window_bounds = array<i64: 1, 128>}, {pipeline_mode = #tpu.pipeline_mode<synchronous>, transform_indices = @transform_13, window_bounds = array<i64: 2, 128>}]} {
    %c0 = arith.constant 0 : index
    %c0_0 = arith.constant 0 : index
    %0 = vector.load %arg1[%c0, %c0_0] : memref<2x128xf32, #tpu.memory_space<vmem>>, vector<2x128xf32>
    %1 = arith.truncf %0 : vector<2x128xf32> to vector<2x128xbf16>
    %c0_1 = arith.constant 0 : index
    %c0_2 = arith.constant 0 : index
    %2 = vector.load %arg2[%c0_1, %c0_2] : memref<128x256xbf16, #tpu.memory_space<vmem>>, vector<128x256xbf16>
    %cst = arith.constant dense<0.000000e+00> : vector<2x256xf32>
    %3 = tpu.matmul %1, %2, %cst {dimension_numbers = #tpu.dot_dimension_numbers<[1], [0], [0], [1], [0, 0, 1, 1], [], []>} : vector<2x128xbf16>, vector<128x256xbf16>, vector<2x256xf32> -> vector<2x256xf32>
    %c0_3 = arith.constant 0 : index
    %c0_4 = arith.constant 0 : index
    %4 = vector.load %arg3[%c0_3, %c0_4] : memref<1x256xf32, #tpu.memory_space<vmem>>, vector<1x256xf32>
    %5 = vector.broadcast %4 : vector<1x256xf32> to vector<2x256xf32>
    %6 = arith.addf %3, %5 : vector<2x256xf32>
    %cst_5 = arith.constant 0.000000e+00 : f32
    %7 = vector.broadcast %cst_5 : f32 to vector<2x256xf32>
    %8 = arith.maximumf %6, %7 : vector<2x256xf32>
    %9 = arith.truncf %8 : vector<2x256xf32> to vector<2x256xbf16>
    %c0_6 = arith.constant 0 : index
    %c0_7 = arith.constant 0 : index
    %10 = vector.load %arg4[%c0_6, %c0_7] : memref<256x512xbf16, #tpu.memory_space<vmem>>, vector<256x512xbf16>
    %cst_8 = arith.constant dense<0.000000e+00> : vector<2x512xf32>
    %11 = tpu.matmul %9, %10, %cst_8 {dimension_numbers = #tpu.dot_dimension_numbers<[1], [0], [0], [1], [0, 0, 1, 1], [], []>} : vector<2x256xbf16>, vector<256x512xbf16>, vector<2x512xf32> -> vector<2x512xf32>
    %c0_9 = arith.constant 0 : index
    %c0_10 = arith.constant 0 : index
    %12 = vector.load %arg5[%c0_9, %c0_10] : memref<1x512xf32, #tpu.memory_space<vmem>>, vector<1x512xf32>
    %13 = vector.broadcast %12 : vector<1x512xf32> to vector<2x512xf32>
    %14 = arith.addf %11, %13 : vector<2x512xf32>
    %cst_11 = arith.constant 0.000000e+00 : f32
    %15 = vector.broadcast %cst_11 : f32 to vector<2x512xf32>
    %16 = arith.maximumf %14, %15 : vector<2x512xf32>
    %17 = arith.truncf %16 : vector<2x512xf32> to vector<2x512xbf16>
    %c0_12 = arith.constant 0 : index
    %c0_13 = arith.constant 0 : index
    %18 = vector.load %arg6[%c0_12, %c0_13] : memref<512x256xbf16, #tpu.memory_space<vmem>>, vector<512x256xbf16>
    %cst_14 = arith.constant dense<0.000000e+00> : vector<2x256xf32>
    %19 = tpu.matmul %17, %18, %cst_14 {dimension_numbers = #tpu.dot_dimension_numbers<[1], [0], [0], [1], [0, 0, 1, 1], [], []>} : vector<2x512xbf16>, vector<512x256xbf16>, vector<2x256xf32> -> vector<2x256xf32>
    %c0_15 = arith.constant 0 : index
    %c0_16 = arith.constant 0 : index
    %20 = vector.load %arg7[%c0_15, %c0_16] : memref<1x256xf32, #tpu.memory_space<vmem>>, vector<1x256xf32>
    %21 = vector.broadcast %20 : vector<1x256xf32> to vector<2x256xf32>
    %22 = arith.addf %19, %21 : vector<2x256xf32>
    %23 = math.tanh %22 : vector<2x256xf32>
    %24 = arith.truncf %23 : vector<2x256xf32> to vector<2x256xbf16>
    %c0_17 = arith.constant 0 : index
    %c0_18 = arith.constant 0 : index
    %25 = vector.load %arg8[%c0_17, %c0_18] : memref<256x512xbf16, #tpu.memory_space<vmem>>, vector<256x512xbf16>
    %cst_19 = arith.constant dense<0.000000e+00> : vector<2x512xf32>
    %26 = tpu.matmul %24, %25, %cst_19 {dimension_numbers = #tpu.dot_dimension_numbers<[1], [0], [0], [1], [0, 0, 1, 1], [], []>} : vector<2x256xbf16>, vector<256x512xbf16>, vector<2x512xf32> -> vector<2x512xf32>
    %c0_20 = arith.constant 0 : index
    %c0_21 = arith.constant 0 : index
    %27 = vector.load %arg9[%c0_20, %c0_21] : memref<1x512xf32, #tpu.memory_space<vmem>>, vector<1x512xf32>
    %28 = vector.broadcast %27 : vector<1x512xf32> to vector<2x512xf32>
    %29 = arith.addf %26, %28 : vector<2x512xf32>
    %cst_22 = arith.constant 0.000000e+00 : f32
    %30 = vector.broadcast %cst_22 : f32 to vector<2x512xf32>
    %31 = arith.cmpf oge, %29, %30 : vector<2x512xf32>
    %cst_23 = arith.constant 2.000000e-01 : f32
    %32 = vector.broadcast %cst_23 : f32 to vector<2x512xf32>
    %33 = arith.mulf %32, %29 : vector<2x512xf32>
    %34 = arith.select %31, %29, %33 : vector<2x512xi1>, vector<2x512xf32>
    %35 = arith.truncf %34 : vector<2x512xf32> to vector<2x512xbf16>
    %c0_24 = arith.constant 0 : index
    %c0_25 = arith.constant 0 : index
    %36 = vector.load %arg10[%c0_24, %c0_25] : memref<512x256xbf16, #tpu.memory_space<vmem>>, vector<512x256xbf16>
    %cst_26 = arith.constant dense<0.000000e+00> : vector<2x256xf32>
    %37 = tpu.matmul %35, %36, %cst_26 {dimension_numbers = #tpu.dot_dimension_numbers<[1], [0], [0], [1], [0, 0, 1, 1], [], []>} : vector<2x512xbf16>, vector<512x256xbf16>, vector<2x256xf32> -> vector<2x256xf32>
    %c0_27 = arith.constant 0 : index
    %c0_28 = arith.constant 0 : index
    %38 = vector.load %arg11[%c0_27, %c0_28] : memref<1x256xf32, #tpu.memory_space<vmem>>, vector<1x256xf32>
    %39 = vector.broadcast %38 : vector<1x256xf32> to vector<2x256xf32>
    %40 = arith.addf %37, %39 : vector<2x256xf32>
    %cst_29 = arith.constant 0.000000e+00 : f32
    %41 = vector.broadcast %cst_29 : f32 to vector<2x256xf32>
    %42 = arith.cmpf oge, %40, %41 : vector<2x256xf32>
    %cst_30 = arith.constant 2.000000e-01 : f32
    %43 = vector.broadcast %cst_30 : f32 to vector<2x256xf32>
    %44 = arith.mulf %43, %40 : vector<2x256xf32>
    %45 = arith.select %42, %40, %44 : vector<2x256xi1>, vector<2x256xf32>
    %46 = arith.truncf %45 : vector<2x256xf32> to vector<2x256xbf16>
    %c0_31 = arith.constant 0 : index
    %c0_32 = arith.constant 0 : index
    %47 = vector.load %arg12[%c0_31, %c0_32] : memref<256x128xbf16, #tpu.memory_space<vmem>>, vector<256x128xbf16>
    %cst_33 = arith.constant dense<0.000000e+00> : vector<2x128xf32>
    %48 = tpu.matmul %46, %47, %cst_33 {dimension_numbers = #tpu.dot_dimension_numbers<[1], [0], [0], [1], [0, 0, 1, 1], [], []>} : vector<2x256xbf16>, vector<256x128xbf16>, vector<2x128xf32> -> vector<2x128xf32>
    %c0_34 = arith.constant 0 : index
    %c0_35 = arith.constant 0 : index
    %49 = vector.load %arg13[%c0_34, %c0_35] : memref<1x128xf32, #tpu.memory_space<vmem>>, vector<1x128xf32>
    %50 = vector.broadcast %49 : vector<1x128xf32> to vector<2x128xf32>
    %51 = arith.addf %48, %50 : vector<2x128xf32>
    %cst_36 = arith.constant 0.000000e+00 : f32
    %52 = vector.broadcast %cst_36 : f32 to vector<2x128xf32>
    %53 = arith.subf %52, %51 : vector<2x128xf32>
    %54 = math.exp %53 : vector<2x128xf32>
    %cst_37 = arith.constant 1.000000e+00 : f32
    %55 = vector.broadcast %cst_37 : f32 to vector<2x128xf32>
    %56 = arith.addf %55, %54 : vector<2x128xf32>
    %57 = tpu.reciprocal %56 {approx = true} : vector<2x128xf32> -> vector<2x128xf32>
    %cst_38 = arith.constant 0.000000e+00 : f32
    %cst_39 = arith.constant 1.000000e+00 : f32
    %58 = vector.broadcast %cst_38 : f32 to vector<2x128xf32>
    %59 = arith.maximumf %58, %57 : vector<2x128xf32>
    %60 = vector.broadcast %cst_39 : f32 to vector<2x128xf32>
    %61 = arith.minimumf %60, %59 : vector<2x128xf32>
    %c0_40 = arith.constant 0 : index
    %c0_41 = arith.constant 0 : index
    %62 = vector.load %arg14[%c0_40, %c0_41] : memref<2x128xf32, #tpu.memory_space<vmem>>, vector<2x128xf32>
    tpu.vector_store %arg14[%c0_40, %c0_41], %61 {strides = array<i32>} : memref<2x128xf32, #tpu.memory_space<vmem>>, vector<2x128xf32>,
    return
  }
  func.func @transform_0(%arg0: i32) -> (i32, i32) {
    %c0_i32 = arith.constant 0 : i32
    %c0_i32_0 = arith.constant 0 : i32
    %c0_i32_1 = arith.constant 0 : i32
    return %c0_i32, %c0_i32_0 : i32, i32
  }
  func.func @transform_1(%arg0: i32) -> (i32, i32) {
    %c0_i32 = arith.constant 0 : i32
    %c0_i32_0 = arith.constant 0 : i32
    %c0_i32_1 = arith.constant 0 : i32
    return %c0_i32, %c0_i32_0 : i32, i32
  }
  func.func @transform_2(%arg0: i32) -> (i32, i32) {
    %c0_i32 = arith.constant 0 : i32
    %c0_i32_0 = arith.constant 0 : i32
    %c0_i32_1 = arith.constant 0 : i32
    return %c0_i32, %c0_i32_0 : i32, i32
  }
  func.func @transform_3(%arg0: i32) -> (i32, i32) {
    %c0_i32 = arith.constant 0 : i32
    %c0_i32_0 = arith.constant 0 : i32
    %c0_i32_1 = arith.constant 0 : i32
    return %c0_i32, %c0_i32_0 : i32, i32
  }
  func.func @transform_4(%arg0: i32) -> (i32, i32) {
    %c0_i32 = arith.constant 0 : i32
    %c0_i32_0 = arith.constant 0 : i32
    %c0_i32_1 = arith.constant 0 : i32
    return %c0_i32, %c0_i32_0 : i32, i32
  }
  func.func @transform_5(%arg0: i32) -> (i32, i32) {
    %c0_i32 = arith.constant 0 : i32
    %c0_i32_0 = arith.constant 0 : i32
    %c0_i32_1 = arith.constant 0 : i32
    return %c0_i32, %c0_i32_0 : i32, i32
  }
  func.func @transform_6(%arg0: i32) -> (i32, i32) {
    %c0_i32 = arith.constant 0 : i32
    %c0_i32_0 = arith.constant 0 : i32
    %c0_i32_1 = arith.constant 0 : i32
    return %c0_i32, %c0_i32_0 : i32, i32
  }
  func.func @transform_7(%arg0: i32) -> (i32, i32) {
    %c0_i32 = arith.constant 0 : i32
    %c0_i32_0 = arith.constant 0 : i32
    %c0_i32_1 = arith.constant 0 : i32
    return %c0_i32, %c0_i32_0 : i32, i32
  }
  func.func @transform_8(%arg0: i32) -> (i32, i32) {
    %c0_i32 = arith.constant 0 : i32
    %c0_i32_0 = arith.constant 0 : i32
    %c0_i32_1 = arith.constant 0 : i32
    return %c0_i32, %c0_i32_0 : i32, i32
  }
  func.func @transform_9(%arg0: i32) -> (i32, i32) {
    %c0_i32 = arith.constant 0 : i32
    %c0_i32_0 = arith.constant 0 : i32
    %c0_i32_1 = arith.constant 0 : i32
    return %c0_i32, %c0_i32_0 : i32, i32
  }
  func.func @transform_10(%arg0: i32) -> (i32, i32) {
    %c0_i32 = arith.constant 0 : i32
    %c0_i32_0 = arith.constant 0 : i32
    %c0_i32_1 = arith.constant 0 : i32
    return %c0_i32, %c0_i32_0 : i32, i32
  }
  func.func @transform_11(%arg0: i32) -> (i32, i32) {
    %c0_i32 = arith.constant 0 : i32
    %c0_i32_0 = arith.constant 0 : i32
    %c0_i32_1 = arith.constant 0 : i32
    return %c0_i32, %c0_i32_0 : i32, i32
  }
  func.func @transform_12(%arg0: i32) -> (i32, i32) {
    %c0_i32 = arith.constant 0 : i32
    %c0_i32_0 = arith.constant 0 : i32
    %c0_i32_1 = arith.constant 0 : i32
    return %c0_i32, %c0_i32_0 : i32, i32
  }
  func.func @transform_13(%arg0: i32) -> (i32, i32) {
    %c0_i32 = arith.constant 0 : i32
    %c0_i32_0 = arith.constant 0 : i32
    %c0_i32_1 = arith.constant 0 : i32
    return %c0_i32, %c0_i32_0 : i32, i32
  }
}

</mosaic_0001>

<llo_original>
// kernel: gan_forward.1
$region0: #{gan_forward.1}
  #allocation0 [shape = 'u32[]', space=smem, size = 0x4, offset = 0x4, fixed_abs, tag = 'smem constant byte address 0x4 - core index']
  #allocation1 [shape = 'u32[144,128]{1,0:T(1,128)}', space=vmem, size = 0x12000, scoped, tag = 'internal scratch']
  %s0 = inlined_call_operand.vmem [shape: f32[2,128], index: 0, kind: input, shape index: {}]
  %s1 = inlined_call_operand.hbm [shape: bf16[128,256], index: 1, kind: input, shape index: {}]
  %s2 = inlined_call_operand.hbm [shape: f32[1,256], index: 2, kind: input, shape index: {}]
  %s3 = inlined_call_operand.hbm [shape: bf16[256,512], index: 3, kind: input, shape index: {}]
  %s4 = inlined_call_operand.vmem [shape: f32[1,512], index: 4, kind: input, shape index: {}]
  %s5 = inlined_call_operand.hbm [shape: bf16[512,256], index: 5, kind: input, shape index: {}]
  %s6 = inlined_call_operand.vmem [shape: f32[1,256], index: 6, kind: input, shape index: {}]
  %s7 = inlined_call_operand.hbm [shape: bf16[256,512], index: 7, kind: input, shape index: {}]
  %s8 = inlined_call_operand.vmem [shape: f32[1,512], index: 8, kind: input, shape index: {}]
  %s9 = inlined_call_operand.hbm [shape: bf16[512,256], index: 9, kind: input, shape index: {}]
  %s10 = inlined_call_operand.vmem [shape: f32[1,256], index: 10, kind: input, shape index: {}]
  %s11 = inlined_call_operand.hbm [shape: bf16[256,128], index: 11, kind: input, shape index: {}]
  %s12 = inlined_call_operand.vmem [shape: f32[1,128], index: 12, kind: input, shape index: {}]
  %s13 = inlined_call_operand.vmem [shape: f32[2,128], index: 13, kind: output, shape index: {}]
  %s14 = sld [smem:[#allocation0]]
  $region90: #{gan_forward.1} parent=0
    _
  %s16 = ssub.s32 1, %s14
  %s17 = scalar_select 0, %s16, %s14
  $region1: #{gan_forward.1} parent=0
    #allocation2 [shape = 'u8[65536]{0}', space=vmem, size = 0x10000, scoped, tag = 'input window, operand 1, single buffered']
    #allocation3 [shape = 's32[1]{0}', space=sflag, size = 0x4, scoped, tag = 'scoped memory for gan_forward.1']
    #allocation4 [shape = 'u8[1024]{0}', space=vmem, size = 0x400, scoped, tag = 'input window, operand 2, single buffered']
    #allocation5 [shape = 's32[1]{0}', space=sflag, size = 0x4, scoped, tag = 'scoped memory for gan_forward.1']
    #allocation6 [shape = 'u8[262144]{0}', space=vmem, size = 0x40000, scoped, tag = 'input window, operand 3, single buffered']
    #allocation7 [shape = 'u8[262144]{0}', space=vmem, size = 0x40000, scoped, tag = 'input window, operand 5, single buffered']
    #allocation8 [shape = 's32[1]{0}', space=sflag, size = 0x4, scoped, tag = 'scoped memory for gan_forward.1']
    #allocation9 [shape = 'u8[262144]{0}', space=vmem, size = 0x40000, scoped, tag = 'input window, operand 7, single buffered']
    #allocation10 [shape = 'u8[262144]{0}', space=vmem, size = 0x40000, scoped, tag = 'input window, operand 9, single buffered']
    #allocation11 [shape = 's32[1]{0}', space=sflag, size = 0x4, scoped, tag = 'scoped memory for gan_forward.1']
    #allocation12 [shape = 'u8[65536]{0}', space=vmem, size = 0x10000, scoped, tag = 'input window, operand 11, single buffered']
    %18 = vsyncpa [#allocation3], 0
    %19 = vsyncpa [#allocation5], 0
    %20 = vsyncpa [#allocation8], 0
    %21 = vsyncpa [#allocation11], 0
    // Predicated region
    $region2: #{gan_forward.1} parent=1 // pred_check
      _
    $region3: #{gan_forward.1} parent=1 // pred_check_branch
      %23 = sbr.rel (0) target = $region5
    $region4: #{gan_forward.1} parent=1 // pred_region
      _
    $region5: #{gan_forward.1} parent=1 // pred_fallthru
      _
    // Predicated region
    $region6: #{gan_forward.1} parent=1 // pred_check
      _
    $region7: #{gan_forward.1} parent=1 // pred_check_branch
      %25 = sbr.rel (0) target = $region9
    $region8: #{gan_forward.1} parent=1 // pred_region
      %s27 = ssub.s32 2048, 2048
      %28 = vsyncadd [#allocation3], %s27
      %s29 = sshll.u32 [#allocation2], 4
      %s30 = int_to_ptr.vmem [resolvable:$true] %s29
      %35 = dma.hbm_to_vmem [thread:$0]  %s1, 2048, %s30, [#allocation3], 128, 128, 8
    $region9: #{gan_forward.1} parent=1 // pred_fallthru
      _
    // Predicated region
    $region10: #{gan_forward.1} parent=1 // pred_check
      _
    $region11: #{gan_forward.1} parent=1 // pred_check_branch
      %37 = sbr.rel (0) target = $region13
    $region12: #{gan_forward.1} parent=1 // pred_region
      %s39 = ssub.s32 32, 32
      %40 = vsyncadd [#allocation5], %s39
      %s42 = sshll.u32 [#allocation4], 4
      %s43 = int_to_ptr.vmem [resolvable:$true] %s42
      %45 = dma.hbm_to_vmem [thread:$0]  %s2, 32, %s43, [#allocation5]
    $region13: #{gan_forward.1} parent=1 // pred_fallthru
      _
    // Predicated region
    $region14: #{gan_forward.1} parent=1 // pred_check
      _
    $region15: #{gan_forward.1} parent=1 // pred_check_branch
      %47 = sbr.rel (0) target = $region17
    $region16: #{gan_forward.1} parent=1 // pred_region
      %s49 = ssub.s32 8192, 8192
      %50 = vsyncadd [#allocation5], %s49
      %s51 = sshll.u32 [#allocation6], 4
      %s52 = int_to_ptr.vmem [resolvable:$true] %s51
      %57 = dma.hbm_to_vmem [thread:$0]  %s3, 8192, %s52, [#allocation5], 256, 256, 16
    $region17: #{gan_forward.1} parent=1 // pred_fallthru
      _
    // Predicated region
    $region18: #{gan_forward.1} parent=1 // pred_check
      _
    $region19: #{gan_forward.1} parent=1 // pred_check_branch
      %59 = sbr.rel (0) target = $region21
    $region20: #{gan_forward.1} parent=1 // pred_region
      _
    $region21: #{gan_forward.1} parent=1 // pred_fallthru
      _
    // Predicated region
    $region22: #{gan_forward.1} parent=1 // pred_check
      _
    $region23: #{gan_forward.1} parent=1 // pred_check_branch
      %61 = sbr.rel (0) target = $region25
    $region24: #{gan_forward.1} parent=1 // pred_region
      %s63 = ssub.s32 8192, 8192
      %64 = vsyncadd [#allocation8], %s63
      %s65 = sshll.u32 [#allocation7], 4
      %s66 = int_to_ptr.vmem [resolvable:$true] %s65
      %71 = dma.hbm_to_vmem [thread:$0]  %s5, 8192, %s66, [#allocation8], 128, 128, 8
    $region25: #{gan_forward.1} parent=1 // pred_fallthru
      _
    // Predicated region
    $region26: #{gan_forward.1} parent=1 // pred_check
      _
    $region27: #{gan_forward.1} parent=1 // pred_check_branch
      %73 = sbr.rel (0) target = $region29
    $region28: #{gan_forward.1} parent=1 // pred_region
      _
    $region29: #{gan_forward.1} parent=1 // pred_fallthru
      _
    // Predicated region
    $region30: #{gan_forward.1} parent=1 // pred_check
      _
    $region31: #{gan_forward.1} parent=1 // pred_check_branch
      %75 = sbr.rel (0) target = $region33
    $region32: #{gan_forward.1} parent=1 // pred_region
      %s77 = ssub.s32 8192, 8192
      %78 = vsyncadd [#allocation8], %s77
      %s79 = sshll.u32 [#allocation9], 4
      %s80 = int_to_ptr.vmem [resolvable:$true] %s79
      %85 = dma.hbm_to_vmem [thread:$0]  %s7, 8192, %s80, [#allocation8], 256, 256, 16
    $region33: #{gan_forward.1} parent=1 // pred_fallthru
      _
    // Predicated region
    $region34: #{gan_forward.1} parent=1 // pred_check
      _
    $region35: #{gan_forward.1} parent=1 // pred_check_branch
      %87 = sbr.rel (0) target = $region37
    $region36: #{gan_forward.1} parent=1 // pred_region
      _
    $region37: #{gan_forward.1} parent=1 // pred_fallthru
      _
    // Predicated region
    $region38: #{gan_forward.1} parent=1 // pred_check
      _
    $region39: #{gan_forward.1} parent=1 // pred_check_branch
      %89 = sbr.rel (0) target = $region41
    $region40: #{gan_forward.1} parent=1 // pred_region
      %s91 = ssub.s32 8192, 8192
      %92 = vsyncadd [#allocation11], %s91
      %s93 = sshll.u32 [#allocation10], 4
      %s94 = int_to_ptr.vmem [resolvable:$true] %s93
      %99 = dma.hbm_to_vmem [thread:$0]  %s9, 8192, %s94, [#allocation11], 128, 128, 8
    $region41: #{gan_forward.1} parent=1 // pred_fallthru
      _
    // Predicated region
    $region42: #{gan_forward.1} parent=1 // pred_check
      _
    $region43: #{gan_forward.1} parent=1 // pred_check_branch
      %101 = sbr.rel (0) target = $region45
    $region44: #{gan_forward.1} parent=1 // pred_region
      _
    $region45: #{gan_forward.1} parent=1 // pred_fallthru
      _
    // Predicated region
    $region46: #{gan_forward.1} parent=1 // pred_check
      _
    $region47: #{gan_forward.1} parent=1 // pred_check_branch
      %103 = sbr.rel (0) target = $region49
    $region48: #{gan_forward.1} parent=1 // pred_region
      %s105 = ssub.s32 2048, 2048
      %106 = vsyncadd [#allocation11], %s105
      %s107 = sshll.u32 [#allocation12], 4
      %s108 = int_to_ptr.vmem [resolvable:$true] %s107
      %113 = dma.hbm_to_vmem [thread:$0]  %s11, 2048, %s108, [#allocation11], 64, 64, 4
    $region49: #{gan_forward.1} parent=1 // pred_fallthru
      _
    // Predicated region
    $region50: #{gan_forward.1} parent=1 // pred_check
      _
    $region51: #{gan_forward.1} parent=1 // pred_check_branch
      %115 = sbr.rel (0) target = $region53
    $region52: #{gan_forward.1} parent=1 // pred_region
      _
    $region53: #{gan_forward.1} parent=1 // pred_fallthru
      _
    // Predicated region
    $region54: #{gan_forward.1} parent=1 // pred_check
      _
    $region55: #{gan_forward.1} parent=1 // pred_check_branch
      %117 = sbr.rel (0) target = $region57
    $region56: #{gan_forward.1} parent=1 // pred_region
      %118 = dma.done [#allocation3], 2048
    $region57: #{gan_forward.1} parent=1 // pred_fallthru
      _
    // Predicated region
    $region58: #{gan_forward.1} parent=1 // pred_check
      _
    $region59: #{gan_forward.1} parent=1 // pred_check_branch
      %120 = sbr.rel (0) target = $region61
    $region60: #{gan_forward.1} parent=1 // pred_region
      %121 = dma.done [#allocation5], 32
    $region61: #{gan_forward.1} parent=1 // pred_fallthru
      _
    // Predicated region
    $region62: #{gan_forward.1} parent=1 // pred_check
      _
    $region63: #{gan_forward.1} parent=1 // pred_check_branch
      %123 = sbr.rel (0) target = $region65
    $region64: #{gan_forward.1} parent=1 // pred_region
      %124 = dma.done [#allocation5], 8192
    $region65: #{gan_forward.1} parent=1 // pred_fallthru
      _
    // Predicated region
    $region66: #{gan_forward.1} parent=1 // pred_check
      _
    $region67: #{gan_forward.1} parent=1 // pred_check_branch
      %126 = sbr.rel (0) target = $region69
    $region68: #{gan_forward.1} parent=1 // pred_region
      %127 = dma.done [#allocation8], 8192
    $region69: #{gan_forward.1} parent=1 // pred_fallthru
      _
    // Predicated region
    $region70: #{gan_forward.1} parent=1 // pred_check
      _
    $region71: #{gan_forward.1} parent=1 // pred_check_branch
      %129 = sbr.rel (0) target = $region73
    $region72: #{gan_forward.1} parent=1 // pred_region
      %130 = dma.done [#allocation8], 8192
    $region73: #{gan_forward.1} parent=1 // pred_fallthru
      _
    // Predicated region
    $region74: #{gan_forward.1} parent=1 // pred_check
      _
    $region75: #{gan_forward.1} parent=1 // pred_check_branch
      %132 = sbr.rel (0) target = $region77
    $region76: #{gan_forward.1} parent=1 // pred_region
      %133 = dma.done [#allocation11], 8192
    $region77: #{gan_forward.1} parent=1 // pred_fallthru
      _
    // Predicated region
    $region78: #{gan_forward.1} parent=1 // pred_check
      _
    $region79: #{gan_forward.1} parent=1 // pred_check_branch
      %135 = sbr.rel (0) target = $region81
    $region80: #{gan_forward.1} parent=1 // pred_region
      %136 = dma.done [#allocation11], 2048
    $region81: #{gan_forward.1} parent=1 // pred_fallthru
      _
    %v138 = vld [vmem:[%s0] sm:$0x3]
    %v139 = vpack.c.bf16 %v138, %v138
    %v140 = vld [vmem:[#allocation2] sm:$0xff]
    %v141 = vld [vmem:[#allocation2 + $0x8] sm:$0xff]
    %v142 = vld [vmem:[#allocation2 + $0x10] sm:$0xff]
    %v143 = vld [vmem:[#allocation2 + $0x18] sm:$0xff]
    %v144 = vld [vmem:[#allocation2 + $0x20] sm:$0xff]
    %v145 = vld [vmem:[#allocation2 + $0x28] sm:$0xff]
    %v146 = vld [vmem:[#allocation2 + $0x30] sm:$0xff]
    %v147 = vld [vmem:[#allocation2 + $0x38] sm:$0xff]
    %v148 = vld [vmem:[#allocation2 + $0x40] sm:$0xff]
    %v149 = vld [vmem:[#allocation2 + $0x48] sm:$0xff]
    %v150 = vld [vmem:[#allocation2 + $0x50] sm:$0xff]
    %v151 = vld [vmem:[#allocation2 + $0x58] sm:$0xff]
    %v152 = vld [vmem:[#allocation2 + $0x60] sm:$0xff]
    %v153 = vld [vmem:[#allocation2 + $0x68] sm:$0xff]
    %v154 = vld [vmem:[#allocation2 + $0x70] sm:$0xff]
    %v155 = vld [vmem:[#allocation2 + $0x78] sm:$0xff]
    %v156 = vld [vmem:[#allocation4] sm:$0x3]
    %v158 = vlaneseq
    %v159 = vshrl.u32 %v158, 7
    %v160 = vsub.s32 0, %v159
    %v161 = vrot.slane %v156, %v160
    %v162 = vlaneseq
    %v163 = vshrl.u32 %v162, 7
    %v164 = vsub.s32 1, %v163
    %v165 = vrot.slane %v156, %v164
    %v184 = vunpack.c.l.b16 %v140
    %v185 = vunpack.c.h.b16 %v140
    %v186 = vunpack.c.l.b16 %v141
    %v187 = vunpack.c.h.b16 %v141
    %v188 = vunpack.c.l.b16 %v142
    %v189 = vunpack.c.h.b16 %v142
    %v190 = vunpack.c.l.b16 %v143
    %v191 = vunpack.c.h.b16 %v143
    %v192 = vunpack.c.l.b16 %v144
    %v193 = vunpack.c.h.b16 %v144
    %v194 = vunpack.c.l.b16 %v145
    %v195 = vunpack.c.h.b16 %v145
    %v196 = vunpack.c.l.b16 %v146
    %v197 = vunpack.c.h.b16 %v146
    %v198 = vunpack.c.l.b16 %v147
    %v199 = vunpack.c.h.b16 %v147
    %v200 = vunpack.c.l.b16 %v148
    %v201 = vunpack.c.h.b16 %v148
    %v202 = vunpack.c.l.b16 %v149
    %v203 = vunpack.c.h.b16 %v149
    %v204 = vunpack.c.l.b16 %v150
    %v205 = vunpack.c.h.b16 %v150
    %v206 = vunpack.c.l.b16 %v151
    %v207 = vunpack.c.h.b16 %v151
    %v208 = vunpack.c.l.b16 %v152
    %v209 = vunpack.c.h.b16 %v152
    %v210 = vunpack.c.l.b16 %v153
    %v211 = vunpack.c.h.b16 %v153
    %v212 = vunpack.c.l.b16 %v154
    %v213 = vunpack.c.h.b16 %v154
    %v214 = vunpack.c.l.b16 %v155
    %v215 = vunpack.c.h.b16 %v155
    %v216 = vpack.c.b16 %v186, %v184
    %v217 = vpack.c.b16 %v187, %v185
    %v218 = vpack.c.b16 %v190, %v188
    %v219 = vpack.c.b16 %v191, %v189
    %v220 = vpack.c.b16 %v194, %v192
    %v221 = vpack.c.b16 %v195, %v193
    %v222 = vpack.c.b16 %v198, %v196
    %v223 = vpack.c.b16 %v199, %v197
    %v224 = vpack.c.b16 %v202, %v200
    %v225 = vpack.c.b16 %v203, %v201
    %v226 = vpack.c.b16 %v206, %v204
    %v227 = vpack.c.b16 %v207, %v205
    %v228 = vpack.c.b16 %v210, %v208
    %v229 = vpack.c.b16 %v211, %v209
    %v230 = vpack.c.b16 %v214, %v212
    %v231 = vpack.c.b16 %v215, %v213
    %248 = vmatprep.subr.bf16.mxu0 %v217
    %249 = vmatpush1.bf16.msra.mxu0 %v216
    %250 = vmatprep.subr.bf16.mxu0 %v219
    %251 = vmatpush1.bf16.msra.mxu0 %v218
    %252 = vmatprep.subr.bf16.mxu0 %v221
    %253 = vmatpush1.bf16.msra.mxu0 %v220
    %254 = vmatprep.subr.bf16.mxu0 %v223
    %255 = vmatpush1.bf16.msra.mxu0 %v222
    %256 = vmatprep.subr.bf16.mxu0 %v225
    %257 = vmatpush1.bf16.msra.mxu0 %v224
    %258 = vmatprep.subr.bf16.mxu0 %v227
    %259 = vmatpush1.bf16.msra.mxu0 %v226
    %260 = vmatprep.subr.bf16.mxu0 %v229
    %261 = vmatpush1.bf16.msra.mxu0 %v228
    %262 = vmatprep.subr.bf16.mxu0 %v231
    %263 = vmatpush1.bf16.msra.mxu0 %v230
    %264 = vmatprep.subr.bf16.mxu0 0
    %265 = vmatpush1.bf16.msra.mxu0 0
    %266 = vmatprep.subr.bf16.mxu0 0
    %267 = vmatpush1.bf16.msra.mxu0 0
    %268 = vmatprep.subr.bf16.mxu0 0
    %269 = vmatpush1.bf16.msra.mxu0 0
    %270 = vmatprep.subr.bf16.mxu0 0
    %271 = vmatpush1.bf16.msra.mxu0 0
    %272 = vmatprep.subr.bf16.mxu0 0
    %273 = vmatpush1.bf16.msra.mxu0 0
    %274 = vmatprep.subr.bf16.mxu0 0
    %275 = vmatpush1.bf16.msra.mxu0 0
    %276 = vmatprep.subr.bf16.mxu0 0
    %277 = vmatpush1.bf16.msra.mxu0 0
    %278 = vmatprep.subr.bf16.mxu0 0
    %279 = vmatpush1.bf16.msra.mxu0 0
    %280 = vmatprep.mubr.bf16.mxu0 0
    %281 = vmatmul.mubr.bf16.gmra.mrb[0].mxu0 %v139
    %v282 = vpop.f32.mrb[0].mxu0
    %v283 = vadd.f32 %v161, %v282
    %v284 = vpop.f32.mrb[0].mxu0
    %v285 = vadd.f32 %v165, %v284
    %v286 = vpop.f32.mrb[0].mxu0
    %v287 = vpop.f32.mrb[0].mxu0
    %288 = vdwg.mxu0
    %v289 = vmax.f32 %v283, 0.0
    %v290 = vmax.f32 %v285, 0.0
    %v291 = vpack.c.bf16 %v289, %v289
    %v292 = vpack.c.bf16 %v290, %v290
    %v293 = vld [vmem:[#allocation6] sm:$0xff]
    %v294 = vld [vmem:[#allocation6 + $0x8] sm:$0xff]
    %v295 = vld [vmem:[#allocation6 + $0x10] sm:$0xff]
    %v296 = vld [vmem:[#allocation6 + $0x18] sm:$0xff]
    %v297 = vld [vmem:[#allocation6 + $0x20] sm:$0xff]
    %v298 = vld [vmem:[#allocation6 + $0x28] sm:$0xff]
    %v299 = vld [vmem:[#allocation6 + $0x30] sm:$0xff]
    %v300 = vld [vmem:[#allocation6 + $0x38] sm:$0xff]
    %v301 = vld [vmem:[#allocation6 + $0x40] sm:$0xff]
    %v302 = vld [vmem:[#allocation6 + $0x48] sm:$0xff]
    %v303 = vld [vmem:[#allocation6 + $0x50] sm:$0xff]
    %v304 = vld [vmem:[#allocation6 + $0x58] sm:$0xff]
    %v305 = vld [vmem:[#allocation6 + $0x60] sm:$0xff]
    %v306 = vld [vmem:[#allocation6 + $0x68] sm:$0xff]
    %v307 = vld [vmem:[#allocation6 + $0x70] sm:$0xff]
    %v308 = vld [vmem:[#allocation6 + $0x78] sm:$0xff]
    %v309 = vld [vmem:[#allocation6 + $0x80] sm:$0xff]
    %v310 = vld [vmem:[#allocation6 + $0x88] sm:$0xff]
    %v311 = vld [vmem:[#allocation6 + $0x90] sm:$0xff]
    %v312 = vld [vmem:[#allocation6 + $0x98] sm:$0xff]
    %v313 = vld [vmem:[#allocation6 + $0xa0] sm:$0xff]
    %v314 = vld [vmem:[#allocation6 + $0xa8] sm:$0xff]
    %v315 = vld [vmem:[#allocation6 + $0xb0] sm:$0xff]
    %v316 = vld [vmem:[#allocation6 + $0xb8] sm:$0xff]
    %v317 = vld [vmem:[#allocation6 + $0xc0] sm:$0xff]
    %v318 = vld [vmem:[#allocation6 + $0xc8] sm:$0xff]
    %v319 = vld [vmem:[#allocation6 + $0xd0] sm:$0xff]
    %v320 = vld [vmem:[#allocation6 + $0xd8] sm:$0xff]
    %v321 = vld [vmem:[#allocation6 + $0xe0] sm:$0xff]
    %v322 = vld [vmem:[#allocation6 + $0xe8] sm:$0xff]
    %v323 = vld [vmem:[#allocation6 + $0xf0] sm:$0xff]
    %v324 = vld [vmem:[#allocation6 + $0xf8] sm:$0xff]
    %v325 = vld [vmem:[#allocation6 + $0x100] sm:$0xff]
    %v326 = vld [vmem:[#allocation6 + $0x108] sm:$0xff]
    %v327 = vld [vmem:[#allocation6 + $0x110] sm:$0xff]
    %v328 = vld [vmem:[#allocation6 + $0x118] sm:$0xff]
    %v329 = vld [vmem:[#allocation6 + $0x120] sm:$0xff]
    %v330 = vld [vmem:[#allocation6 + $0x128] sm:$0xff]
    %v331 = vld [vmem:[#allocation6 + $0x130] sm:$0xff]
    %v332 = vld [vmem:[#allocation6 + $0x138] sm:$0xff]
    %v333 = vld [vmem:[#allocation6 + $0x140] sm:$0xff]
    %v334 = vld [vmem:[#allocation6 + $0x148] sm:$0xff]
    %v335 = vld [vmem:[#allocation6 + $0x150] sm:$0xff]
    %v336 = vld [vmem:[#allocation6 + $0x158] sm:$0xff]
    %v337 = vld [vmem:[#allocation6 + $0x160] sm:$0xff]
    %v338 = vld [vmem:[#allocation6 + $0x168] sm:$0xff]
    %v339 = vld [vmem:[#allocation6 + $0x170] sm:$0xff]
    %v340 = vld [vmem:[#allocation6 + $0x178] sm:$0xff]
    %v341 = vld [vmem:[#allocation6 + $0x180] sm:$0xff]
    %v342 = vld [vmem:[#allocation6 + $0x188] sm:$0xff]
    %v343 = vld [vmem:[#allocation6 + $0x190] sm:$0xff]
    %v344 = vld [vmem:[#allocation6 + $0x198] sm:$0xff]
    %v345 = vld [vmem:[#allocation6 + $0x1a0] sm:$0xff]
    %v346 = vld [vmem:[#allocation6 + $0x1a8] sm:$0xff]
    %v347 = vld [vmem:[#allocation6 + $0x1b0] sm:$0xff]
    %v348 = vld [vmem:[#allocation6 + $0x1b8] sm:$0xff]
    %v349 = vld [vmem:[#allocation6 + $0x1c0] sm:$0xff]
    %v350 = vld [vmem:[#allocation6 + $0x1c8] sm:$0xff]
    %v351 = vld [vmem:[#allocation6 + $0x1d0] sm:$0xff]
    %v352 = vld [vmem:[#allocation6 + $0x1d8] sm:$0xff]
    %v353 = vld [vmem:[#allocation6 + $0x1e0] sm:$0xff]
    %v354 = vld [vmem:[#allocation6 + $0x1e8] sm:$0xff]
    %v355 = vld [vmem:[#allocation6 + $0x1f0] sm:$0xff]
    %v356 = vld [vmem:[#allocation6 + $0x1f8] sm:$0xff]
    %v357 = vld [vmem:[%s4] sm:$0xf]
    %v359 = vlaneseq
    %v360 = vshrl.u32 %v359, 7
    %v361 = vsub.s32 0, %v360
    %v362 = vrot.slane %v357, %v361
    %v363 = vlaneseq
    %v364 = vshrl.u32 %v363, 7
    %v365 = vsub.s32 1, %v364
    %v366 = vrot.slane %v357, %v365
    %v367 = vlaneseq
    %v368 = vshrl.u32 %v367, 7
    %v369 = vsub.s32 2, %v368
    %v370 = vrot.slane %v357, %v369
    %v371 = vlaneseq
    %v372 = vshrl.u32 %v371, 7
    %v373 = vsub.s32 3, %v372
    %v374 = vrot.slane %v357, %v373
    %v443 = vunpack.c.l.b16 %v293
    %v444 = vunpack.c.h.b16 %v293
    %v445 = vunpack.c.l.b16 %v294
    %v446 = vunpack.c.h.b16 %v294
    %v447 = vunpack.c.l.b16 %v295
    %v448 = vunpack.c.h.b16 %v295
    %v449 = vunpack.c.l.b16 %v296
    %v450 = vunpack.c.h.b16 %v296
    %v451 = vunpack.c.l.b16 %v297
    %v452 = vunpack.c.h.b16 %v297
    %v453 = vunpack.c.l.b16 %v298
    %v454 = vunpack.c.h.b16 %v298
    %v455 = vunpack.c.l.b16 %v299
    %v456 = vunpack.c.h.b16 %v299
    %v457 = vunpack.c.l.b16 %v300
    %v458 = vunpack.c.h.b16 %v300
    %v459 = vunpack.c.l.b16 %v301
    %v460 = vunpack.c.h.b16 %v301
    %v461 = vunpack.c.l.b16 %v302
    %v462 = vunpack.c.h.b16 %v302
    %v463 = vunpack.c.l.b16 %v303
    %v464 = vunpack.c.h.b16 %v303
    %v465 = vunpack.c.l.b16 %v304
    %v466 = vunpack.c.h.b16 %v304
    %v467 = vunpack.c.l.b16 %v305
    %v468 = vunpack.c.h.b16 %v305
    %v469 = vunpack.c.l.b16 %v306
    %v470 = vunpack.c.h.b16 %v306
    %v471 = vunpack.c.l.b16 %v307
    %v472 = vunpack.c.h.b16 %v307
    %v473 = vunpack.c.l.b16 %v308
    %v474 = vunpack.c.h.b16 %v308
    %v475 = vunpack.c.l.b16 %v309
    %v476 = vunpack.c.h.b16 %v309
    %v477 = vunpack.c.l.b16 %v310
    %v478 = vunpack.c.h.b16 %v310
    %v479 = vunpack.c.l.b16 %v311
    %v480 = vunpack.c.h.b16 %v311
    %v481 = vunpack.c.l.b16 %v312
    %v482 = vunpack.c.h.b16 %v312
    %v483 = vunpack.c.l.b16 %v313
    %v484 = vunpack.c.h.b16 %v313
    %v485 = vunpack.c.l.b16 %v314
    %v486 = vunpack.c.h.b16 %v314
    %v487 = vunpack.c.l.b16 %v315
    %v488 = vunpack.c.h.b16 %v315
    %v489 = vunpack.c.l.b16 %v316
    %v490 = vunpack.c.h.b16 %v316
    %v491 = vunpack.c.l.b16 %v317
    %v492 = vunpack.c.h.b16 %v317
    %v493 = vunpack.c.l.b16 %v318
    %v494 = vunpack.c.h.b16 %v318
    %v495 = vunpack.c.l.b16 %v319
    %v496 = vunpack.c.h.b16 %v319
    %v497 = vunpack.c.l.b16 %v320
    %v498 = vunpack.c.h.b16 %v320
    %v499 = vunpack.c.l.b16 %v321
    %v500 = vunpack.c.h.b16 %v321
    %v501 = vunpack.c.l.b16 %v322
    %v502 = vunpack.c.h.b16 %v322
    %v503 = vunpack.c.l.b16 %v323
    %v504 = vunpack.c.h.b16 %v323
    %v505 = vunpack.c.l.b16 %v324
    %v506 = vunpack.c.h.b16 %v324
    %v507 = vunpack.c.l.b16 %v325
    %v508 = vunpack.c.h.b16 %v325
    %v509 = vunpack.c.l.b16 %v326
    %v510 = vunpack.c.h.b16 %v326
    %v511 = vunpack.c.l.b16 %v327
    %v512 = vunpack.c.h.b16 %v327
    %v513 = vunpack.c.l.b16 %v328
    %v514 = vunpack.c.h.b16 %v328
    %v515 = vunpack.c.l.b16 %v329
    %v516 = vunpack.c.h.b16 %v329
    %v517 = vunpack.c.l.b16 %v330
    %v518 = vunpack.c.h.b16 %v330
    %v519 = vunpack.c.l.b16 %v331
    %v520 = vunpack.c.h.b16 %v331
    %v521 = vunpack.c.l.b16 %v332
    %v522 = vunpack.c.h.b16 %v332
    %v523 = vunpack.c.l.b16 %v333
    %v524 = vunpack.c.h.b16 %v333
    %v525 = vunpack.c.l.b16 %v334
    %v526 = vunpack.c.h.b16 %v334
    %v527 = vunpack.c.l.b16 %v335
    %v528 = vunpack.c.h.b16 %v335
    %v529 = vunpack.c.l.b16 %v336
    %v530 = vunpack.c.h.b16 %v336
    %v531 = vunpack.c.l.b16 %v337
    %v532 = vunpack.c.h.b16 %v337
    %v533 = vunpack.c.l.b16 %v338
    %v534 = vunpack.c.h.b16 %v338
    %v535 = vunpack.c.l.b16 %v339
    %v536 = vunpack.c.h.b16 %v339
    %v537 = vunpack.c.l.b16 %v340
    %v538 = vunpack.c.h.b16 %v340
    %v539 = vunpack.c.l.b16 %v341
    %v540 = vunpack.c.h.b16 %v341
    %v541 = vunpack.c.l.b16 %v342
    %v542 = vunpack.c.h.b16 %v342
    %v543 = vunpack.c.l.b16 %v343
    %v544 = vunpack.c.h.b16 %v343
    %v545 = vunpack.c.l.b16 %v344
    %v546 = vunpack.c.h.b16 %v344
    %v547 = vunpack.c.l.b16 %v345
    %v548 = vunpack.c.h.b16 %v345
    %v549 = vunpack.c.l.b16 %v346
    %v550 = vunpack.c.h.b16 %v346
    %v551 = vunpack.c.l.b16 %v347
    %v552 = vunpack.c.h.b16 %v347
    %v553 = vunpack.c.l.b16 %v348
    %v554 = vunpack.c.h.b16 %v348
    %v555 = vunpack.c.l.b16 %v349
    %v556 = vunpack.c.h.b16 %v349
    %v557 = vunpack.c.l.b16 %v350
    %v558 = vunpack.c.h.b16 %v350
    %v559 = vunpack.c.l.b16 %v351
    %v560 = vunpack.c.h.b16 %v351
    %v561 = vunpack.c.l.b16 %v352
    %v562 = vunpack.c.h.b16 %v352
    %v563 = vunpack.c.l.b16 %v353
    %v564 = vunpack.c.h.b16 %v353
    %v565 = vunpack.c.l.b16 %v354
    %v566 = vunpack.c.h.b16 %v354
    %v567 = vunpack.c.l.b16 %v355
    %v568 = vunpack.c.h.b16 %v355
    %v569 = vunpack.c.l.b16 %v356
    %v570 = vunpack.c.h.b16 %v356
    %v571 = vpack.c.b16 %v447, %v443
    %v572 = vpack.c.b16 %v448, %v444
    %v573 = vpack.c.b16 %v449, %v445
    %v574 = vpack.c.b16 %v450, %v446
    %v575 = vpack.c.b16 %v455, %v451
    %v576 = vpack.c.b16 %v456, %v452
    %v577 = vpack.c.b16 %v457, %v453
    %v578 = vpack.c.b16 %v458, %v454
    %v579 = vpack.c.b16 %v463, %v459
    %v580 = vpack.c.b16 %v464, %v460
    %v581 = vpack.c.b16 %v465, %v461
    %v582 = vpack.c.b16 %v466, %v462
    %v583 = vpack.c.b16 %v471, %v467
    %v584 = vpack.c.b16 %v472, %v468
    %v585 = vpack.c.b16 %v473, %v469
    %v586 = vpack.c.b16 %v474, %v470
    %v587 = vpack.c.b16 %v479, %v475
    %v588 = vpack.c.b16 %v480, %v476
    %v589 = vpack.c.b16 %v481, %v477
    %v590 = vpack.c.b16 %v482, %v478
    %v591 = vpack.c.b16 %v487, %v483
    %v592 = vpack.c.b16 %v488, %v484
    %v593 = vpack.c.b16 %v489, %v485
    %v594 = vpack.c.b16 %v490, %v486
    %v595 = vpack.c.b16 %v495, %v491
    %v596 = vpack.c.b16 %v496, %v492
    %v597 = vpack.c.b16 %v497, %v493
    %v598 = vpack.c.b16 %v498, %v494
    %v599 = vpack.c.b16 %v503, %v499
    %v600 = vpack.c.b16 %v504, %v500
    %v601 = vpack.c.b16 %v505, %v501
    %v602 = vpack.c.b16 %v506, %v502
    %v603 = vpack.c.b16 %v511, %v507
    %v604 = vpack.c.b16 %v512, %v508
    %v605 = vpack.c.b16 %v513, %v509
    %v606 = vpack.c.b16 %v514, %v510
    %v607 = vpack.c.b16 %v519, %v515
    %v608 = vpack.c.b16 %v520, %v516
    %v609 = vpack.c.b16 %v521, %v517
    %v610 = vpack.c.b16 %v522, %v518
    %v611 = vpack.c.b16 %v527, %v523
    %v612 = vpack.c.b16 %v528, %v524
    %v613 = vpack.c.b16 %v529, %v525
    %v614 = vpack.c.b16 %v530, %v526
    %v615 = vpack.c.b16 %v535, %v531
    %v616 = vpack.c.b16 %v536, %v532
    %v617 = vpack.c.b16 %v537, %v533
    %v618 = vpack.c.b16 %v538, %v534
    %v619 = vpack.c.b16 %v543, %v539
    %v620 = vpack.c.b16 %v544, %v540
    %v621 = vpack.c.b16 %v545, %v541
    %v622 = vpack.c.b16 %v546, %v542
    %v623 = vpack.c.b16 %v551, %v547
    %v624 = vpack.c.b16 %v552, %v548
    %v625 = vpack.c.b16 %v553, %v549
    %v626 = vpack.c.b16 %v554, %v550
    %v627 = vpack.c.b16 %v559, %v555
    %v628 = vpack.c.b16 %v560, %v556
    %v629 = vpack.c.b16 %v561, %v557
    %v630 = vpack.c.b16 %v562, %v558
    %v631 = vpack.c.b16 %v567, %v563
    %v632 = vpack.c.b16 %v568, %v564
    %v633 = vpack.c.b16 %v569, %v565
    %v634 = vpack.c.b16 %v570, %v566
    %699 = vmatprep.subr.bf16.mxu0 %v572
    %700 = vmatpush1.bf16.msra.mxu0 %v571
    %701 = vmatprep.subr.bf16.mxu0 %v576
    %702 = vmatpush1.bf16.msra.mxu0 %v575
    %703 = vmatprep.subr.bf16.mxu0 %v580
    %704 = vmatpush1.bf16.msra.mxu0 %v579
    %705 = vmatprep.subr.bf16.mxu0 %v584
    %706 = vmatpush1.bf16.msra.mxu0 %v583
    %707 = vmatprep.subr.bf16.mxu0 %v588
    %708 = vmatpush1.bf16.msra.mxu0 %v587
    %709 = vmatprep.subr.bf16.mxu0 %v592
    %710 = vmatpush1.bf16.msra.mxu0 %v591
    %711 = vmatprep.subr.bf16.mxu0 %v596
    %712 = vmatpush1.bf16.msra.mxu0 %v595
    %713 = vmatprep.subr.bf16.mxu0 %v600
    %714 = vmatpush1.bf16.msra.mxu0 %v599
    %715 = vmatprep.subr.bf16.mxu0 %v604
    %716 = vmatpush1.bf16.msra.mxu0 %v603
    %717 = vmatprep.subr.bf16.mxu0 %v608
    %718 = vmatpush1.bf16.msra.mxu0 %v607
    %719 = vmatprep.subr.bf16.mxu0 %v612
    %720 = vmatpush1.bf16.msra.mxu0 %v611
    %721 = vmatprep.subr.bf16.mxu0 %v616
    %722 = vmatpush1.bf16.msra.mxu0 %v615
    %723 = vmatprep.subr.bf16.mxu0 %v620
    %724 = vmatpush1.bf16.msra.mxu0 %v619
    %725 = vmatprep.subr.bf16.mxu0 %v624
    %726 = vmatpush1.bf16.msra.mxu0 %v623
    %727 = vmatprep.subr.bf16.mxu0 %v628
    %728 = vmatpush1.bf16.msra.mxu0 %v627
    %729 = vmatprep.subr.bf16.mxu0 %v632
    %730 = vmatpush1.bf16.msra.mxu0 %v631
    %731 = vmatprep.mubr.bf16.mxu0 %v292
    %732 = vmatmul.mubr.bf16.gmra.mrb[0].mxu0 %v291
    %v733 = vpop.f32.mrb[0].mxu0
    %v734 = vadd.f32 %v362, %v733
    %v735 = vpop.f32.mrb[0].mxu0
    %v736 = vadd.f32 %v366, %v735
    %v737 = vpop.f32.mrb[0].mxu0
    %v738 = vpop.f32.mrb[0].mxu0
    %739 = vdwg.mxu0
    %740 = vmatprep.subr.bf16.mxu0 %v574
    %741 = vmatpush1.bf16.msra.mxu0 %v573
    %742 = vmatprep.subr.bf16.mxu0 %v578
    %743 = vmatpush1.bf16.msra.mxu0 %v577
    %744 = vmatprep.subr.bf16.mxu0 %v582
    %745 = vmatpush1.bf16.msra.mxu0 %v581
    %746 = vmatprep.subr.bf16.mxu0 %v586
    %747 = vmatpush1.bf16.msra.mxu0 %v585
    %748 = vmatprep.subr.bf16.mxu0 %v590
    %749 = vmatpush1.bf16.msra.mxu0 %v589
    %750 = vmatprep.subr.bf16.mxu0 %v594
    %751 = vmatpush1.bf16.msra.mxu0 %v593
    %752 = vmatprep.subr.bf16.mxu0 %v598
    %753 = vmatpush1.bf16.msra.mxu0 %v597
    %754 = vmatprep.subr.bf16.mxu0 %v602
    %755 = vmatpush1.bf16.msra.mxu0 %v601
    %756 = vmatprep.subr.bf16.mxu0 %v606
    %757 = vmatpush1.bf16.msra.mxu0 %v605
    %758 = vmatprep.subr.bf16.mxu0 %v610
    %759 = vmatpush1.bf16.msra.mxu0 %v609
    %760 = vmatprep.subr.bf16.mxu0 %v614
    %761 = vmatpush1.bf16.msra.mxu0 %v613
    %762 = vmatprep.subr.bf16.mxu0 %v618
    %763 = vmatpush1.bf16.msra.mxu0 %v617
    %764 = vmatprep.subr.bf16.mxu0 %v622
    %765 = vmatpush1.bf16.msra.mxu0 %v621
    %766 = vmatprep.subr.bf16.mxu0 %v626
    %767 = vmatpush1.bf16.msra.mxu0 %v625
    %768 = vmatprep.subr.bf16.mxu0 %v630
    %769 = vmatpush1.bf16.msra.mxu0 %v629
    %770 = vmatprep.subr.bf16.mxu0 %v634
    %771 = vmatpush1.bf16.msra.mxu0 %v633
    %772 = vmatprep.mubr.bf16.mxu0 %v292
    %773 = vmatmul.mubr.bf16.gmra.mrb[0].mxu0 %v291
    %v774 = vpop.f32.mrb[0].mxu0
    %v775 = vadd.f32 %v370, %v774
    %v776 = vpop.f32.mrb[0].mxu0
    %v777 = vadd.f32 %v374, %v776
    %v778 = vpop.f32.mrb[0].mxu0
    %v779 = vpop.f32.mrb[0].mxu0
    %780 = vdwg.mxu0
    %v781 = vmax.f32 %v734, 0.0
    %v782 = vmax.f32 %v736, 0.0
    %v783 = vmax.f32 %v775, 0.0
    %v784 = vmax.f32 %v777, 0.0
    %v785 = vpack.c.bf16 %v781, %v781
    %v786 = vpack.c.bf16 %v782, %v782
    %v787 = vpack.c.bf16 %v783, %v783
    %v788 = vpack.c.bf16 %v784, %v784
    %v789 = vld [vmem:[#allocation7] sm:$0xff]
    %v790 = vld [vmem:[#allocation7 + $0x8] sm:$0xff]
    %v791 = vld [vmem:[#allocation7 + $0x10] sm:$0xff]
    %v792 = vld [vmem:[#allocation7 + $0x18] sm:$0xff]
    %v793 = vld [vmem:[#allocation7 + $0x20] sm:$0xff]
    %v794 = vld [vmem:[#allocation7 + $0x28] sm:$0xff]
    %v795 = vld [vmem:[#allocation7 + $0x30] sm:$0xff]
    %v796 = vld [vmem:[#allocation7 + $0x38] sm:$0xff]
    %v797 = vld [vmem:[#allocation7 + $0x40] sm:$0xff]
    %v798 = vld [vmem:[#allocation7 + $0x48] sm:$0xff]
    %v799 = vld [vmem:[#allocation7 + $0x50] sm:$0xff]
    %v800 = vld [vmem:[#allocation7 + $0x58] sm:$0xff]
    %v801 = vld [vmem:[#allocation7 + $0x60] sm:$0xff]
    %v802 = vld [vmem:[#allocation7 + $0x68] sm:$0xff]
    %v803 = vld [vmem:[#allocation7 + $0x70] sm:$0xff]
    %v804 = vld [vmem:[#allocation7 + $0x78] sm:$0xff]
    %v805 = vld [vmem:[#allocation7 + $0x80] sm:$0xff]
    %v806 = vld [vmem:[#allocation7 + $0x88] sm:$0xff]
    %v807 = vld [vmem:[#allocation7 + $0x90] sm:$0xff]
    %v808 = vld [vmem:[#allocation7 + $0x98] sm:$0xff]
    %v809 = vld [vmem:[#allocation7 + $0xa0] sm:$0xff]
    %v810 = vld [vmem:[#allocation7 + $0xa8] sm:$0xff]
    %v811 = vld [vmem:[#allocation7 + $0xb0] sm:$0xff]
    %v812 = vld [vmem:[#allocation7 + $0xb8] sm:$0xff]
    %v813 = vld [vmem:[#allocation7 + $0xc0] sm:$0xff]
    %v814 = vld [vmem:[#allocation7 + $0xc8] sm:$0xff]
    %v815 = vld [vmem:[#allocation7 + $0xd0] sm:$0xff]
    %v816 = vld [vmem:[#allocation7 + $0xd8] sm:$0xff]
    %v817 = vld [vmem:[#allocation7 + $0xe0] sm:$0xff]
    %v818 = vld [vmem:[#allocation7 + $0xe8] sm:$0xff]
    %v819 = vld [vmem:[#allocation7 + $0xf0] sm:$0xff]
    %v820 = vld [vmem:[#allocation7 + $0xf8] sm:$0xff]
    %v821 = vld [vmem:[#allocation7 + $0x100] sm:$0xff]
    %v822 = vld [vmem:[#allocation7 + $0x108] sm:$0xff]
    %v823 = vld [vmem:[#allocation7 + $0x110] sm:$0xff]
    %v824 = vld [vmem:[#allocation7 + $0x118] sm:$0xff]
    %v825 = vld [vmem:[#allocation7 + $0x120] sm:$0xff]
    %v826 = vld [vmem:[#allocation7 + $0x128] sm:$0xff]
    %v827 = vld [vmem:[#allocation7 + $0x130] sm:$0xff]
    %v828 = vld [vmem:[#allocation7 + $0x138] sm:$0xff]
    %v829 = vld [vmem:[#allocation7 + $0x140] sm:$0xff]
    %v830 = vld [vmem:[#allocation7 + $0x148] sm:$0xff]
    %v831 = vld [vmem:[#allocation7 + $0x150] sm:$0xff]
    %v832 = vld [vmem:[#allocation7 + $0x158] sm:$0xff]
    %v833 = vld [vmem:[#allocation7 + $0x160] sm:$0xff]
    %v834 = vld [vmem:[#allocation7 + $0x168] sm:$0xff]
    %v835 = vld [vmem:[#allocation7 + $0x170] sm:$0xff]
    %v836 = vld [vmem:[#allocation7 + $0x178] sm:$0xff]
    %v837 = vld [vmem:[#allocation7 + $0x180] sm:$0xff]
    %v838 = vld [vmem:[#allocation7 + $0x188] sm:$0xff]
    %v839 = vld [vmem:[#allocation7 + $0x190] sm:$0xff]
    %v840 = vld [vmem:[#allocation7 + $0x198] sm:$0xff]
    %v841 = vld [vmem:[#allocation7 + $0x1a0] sm:$0xff]
    %v842 = vld [vmem:[#allocation7 + $0x1a8] sm:$0xff]
    %v843 = vld [vmem:[#allocation7 + $0x1b0] sm:$0xff]
    %v844 = vld [vmem:[#allocation7 + $0x1b8] sm:$0xff]
    %v845 = vld [vmem:[#allocation7 + $0x1c0] sm:$0xff]
    %v846 = vld [vmem:[#allocation7 + $0x1c8] sm:$0xff]
    %v847 = vld [vmem:[#allocation7 + $0x1d0] sm:$0xff]
    %v848 = vld [vmem:[#allocation7 + $0x1d8] sm:$0xff]
    %v849 = vld [vmem:[#allocation7 + $0x1e0] sm:$0xff]
    %v850 = vld [vmem:[#allocation7 + $0x1e8] sm:$0xff]
    %v851 = vld [vmem:[#allocation7 + $0x1f0] sm:$0xff]
    %v852 = vld [vmem:[#allocation7 + $0x1f8] sm:$0xff]
    %v853 = vld [vmem:[%s6] sm:$0x3]
    %v855 = vlaneseq
    %v856 = vshrl.u32 %v855, 7
    %v857 = vsub.s32 0, %v856
    %v858 = vrot.slane %v853, %v857
    %v859 = vlaneseq
    %v860 = vshrl.u32 %v859, 7
    %v861 = vsub.s32 1, %v860
    %v862 = vrot.slane %v853, %v861
    %v929 = vunpack.c.l.b16 %v789
    %v930 = vunpack.c.h.b16 %v789
    %v931 = vunpack.c.l.b16 %v790
    %v932 = vunpack.c.h.b16 %v790
    %v933 = vunpack.c.l.b16 %v791
    %v934 = vunpack.c.h.b16 %v791
    %v935 = vunpack.c.l.b16 %v792
    %v936 = vunpack.c.h.b16 %v792
    %v937 = vunpack.c.l.b16 %v793
    %v938 = vunpack.c.h.b16 %v793
    %v939 = vunpack.c.l.b16 %v794
    %v940 = vunpack.c.h.b16 %v794
    %v941 = vunpack.c.l.b16 %v795
    %v942 = vunpack.c.h.b16 %v795
    %v943 = vunpack.c.l.b16 %v796
    %v944 = vunpack.c.h.b16 %v796
    %v945 = vunpack.c.l.b16 %v797
    %v946 = vunpack.c.h.b16 %v797
    %v947 = vunpack.c.l.b16 %v798
    %v948 = vunpack.c.h.b16 %v798
    %v949 = vunpack.c.l.b16 %v799
    %v950 = vunpack.c.h.b16 %v799
    %v951 = vunpack.c.l.b16 %v800
    %v952 = vunpack.c.h.b16 %v800
    %v953 = vunpack.c.l.b16 %v801
    %v954 = vunpack.c.h.b16 %v801
    %v955 = vunpack.c.l.b16 %v802
    %v956 = vunpack.c.h.b16 %v802
    %v957 = vunpack.c.l.b16 %v803
    %v958 = vunpack.c.h.b16 %v803
    %v959 = vunpack.c.l.b16 %v804
    %v960 = vunpack.c.h.b16 %v804
    %v961 = vunpack.c.l.b16 %v805
    %v962 = vunpack.c.h.b16 %v805
    %v963 = vunpack.c.l.b16 %v806
    %v964 = vunpack.c.h.b16 %v806
    %v965 = vunpack.c.l.b16 %v807
    %v966 = vunpack.c.h.b16 %v807
    %v967 = vunpack.c.l.b16 %v808
    %v968 = vunpack.c.h.b16 %v808
    %v969 = vunpack.c.l.b16 %v809
    %v970 = vunpack.c.h.b16 %v809
    %v971 = vunpack.c.l.b16 %v810
    %v972 = vunpack.c.h.b16 %v810
    %v973 = vunpack.c.l.b16 %v811
    %v974 = vunpack.c.h.b16 %v811
    %v975 = vunpack.c.l.b16 %v812
    %v976 = vunpack.c.h.b16 %v812
    %v977 = vunpack.c.l.b16 %v813
    %v978 = vunpack.c.h.b16 %v813
    %v979 = vunpack.c.l.b16 %v814
    %v980 = vunpack.c.h.b16 %v814
    %v981 = vunpack.c.l.b16 %v815
    %v982 = vunpack.c.h.b16 %v815
    %v983 = vunpack.c.l.b16 %v816
    %v984 = vunpack.c.h.b16 %v816
    %v985 = vunpack.c.l.b16 %v817
    %v986 = vunpack.c.h.b16 %v817
    %v987 = vunpack.c.l.b16 %v818
    %v988 = vunpack.c.h.b16 %v818
    %v989 = vunpack.c.l.b16 %v819
    %v990 = vunpack.c.h.b16 %v819
    %v991 = vunpack.c.l.b16 %v820
    %v992 = vunpack.c.h.b16 %v820
    %v993 = vunpack.c.l.b16 %v821
    %v994 = vunpack.c.h.b16 %v821
    %v995 = vunpack.c.l.b16 %v822
    %v996 = vunpack.c.h.b16 %v822
    %v997 = vunpack.c.l.b16 %v823
    %v998 = vunpack.c.h.b16 %v823
    %v999 = vunpack.c.l.b16 %v824
    %v1000 = vunpack.c.h.b16 %v824
    %v1001 = vunpack.c.l.b16 %v825
    %v1002 = vunpack.c.h.b16 %v825
    %v1003 = vunpack.c.l.b16 %v826
    %v1004 = vunpack.c.h.b16 %v826
    %v1005 = vunpack.c.l.b16 %v827
    %v1006 = vunpack.c.h.b16 %v827
    %v1007 = vunpack.c.l.b16 %v828
    %v1008 = vunpack.c.h.b16 %v828
    %v1009 = vunpack.c.l.b16 %v829
    %v1010 = vunpack.c.h.b16 %v829
    %v1011 = vunpack.c.l.b16 %v830
    %v1012 = vunpack.c.h.b16 %v830
    %v1013 = vunpack.c.l.b16 %v831
    %v1014 = vunpack.c.h.b16 %v831
    %v1015 = vunpack.c.l.b16 %v832
    %v1016 = vunpack.c.h.b16 %v832
    %v1017 = vunpack.c.l.b16 %v833
    %v1018 = vunpack.c.h.b16 %v833
    %v1019 = vunpack.c.l.b16 %v834
    %v1020 = vunpack.c.h.b16 %v834
    %v1021 = vunpack.c.l.b16 %v835
    %v1022 = vunpack.c.h.b16 %v835
    %v1023 = vunpack.c.l.b16 %v836
    %v1024 = vunpack.c.h.b16 %v836
    %v1025 = vunpack.c.l.b16 %v837
    %v1026 = vunpack.c.h.b16 %v837
    %v1027 = vunpack.c.l.b16 %v838
    %v1028 = vunpack.c.h.b16 %v838
    %v1029 = vunpack.c.l.b16 %v839
    %v1030 = vunpack.c.h.b16 %v839
    %v1031 = vunpack.c.l.b16 %v840
    %v1032 = vunpack.c.h.b16 %v840
    %v1033 = vunpack.c.l.b16 %v841
    %v1034 = vunpack.c.h.b16 %v841
    %v1035 = vunpack.c.l.b16 %v842
    %v1036 = vunpack.c.h.b16 %v842
    %v1037 = vunpack.c.l.b16 %v843
    %v1038 = vunpack.c.h.b16 %v843
    %v1039 = vunpack.c.l.b16 %v844
    %v1040 = vunpack.c.h.b16 %v844
    %v1041 = vunpack.c.l.b16 %v845
    %v1042 = vunpack.c.h.b16 %v845
    %v1043 = vunpack.c.l.b16 %v846
    %v1044 = vunpack.c.h.b16 %v846
    %v1045 = vunpack.c.l.b16 %v847
    %v1046 = vunpack.c.h.b16 %v847
    %v1047 = vunpack.c.l.b16 %v848
    %v1048 = vunpack.c.h.b16 %v848
    %v1049 = vunpack.c.l.b16 %v849
    %v1050 = vunpack.c.h.b16 %v849
    %v1051 = vunpack.c.l.b16 %v850
    %v1052 = vunpack.c.h.b16 %v850
    %v1053 = vunpack.c.l.b16 %v851
    %v1054 = vunpack.c.h.b16 %v851
    %v1055 = vunpack.c.l.b16 %v852
    %v1056 = vunpack.c.h.b16 %v852
    %v1057 = vpack.c.b16 %v931, %v929
    %v1058 = vpack.c.b16 %v932, %v930
    %v1059 = vpack.c.b16 %v935, %v933
    %v1060 = vpack.c.b16 %v936, %v934
    %v1061 = vpack.c.b16 %v939, %v937
    %v1062 = vpack.c.b16 %v940, %v938
    %v1063 = vpack.c.b16 %v943, %v941
    %v1064 = vpack.c.b16 %v944, %v942
    %v1065 = vpack.c.b16 %v947, %v945
    %v1066 = vpack.c.b16 %v948, %v946
    %v1067 = vpack.c.b16 %v951, %v949
    %v1068 = vpack.c.b16 %v952, %v950
    %v1069 = vpack.c.b16 %v955, %v953
    %v1070 = vpack.c.b16 %v956, %v954
    %v1071 = vpack.c.b16 %v959, %v957
    %v1072 = vpack.c.b16 %v960, %v958
    %v1073 = vpack.c.b16 %v963, %v961
    %v1074 = vpack.c.b16 %v964, %v962
    %v1075 = vpack.c.b16 %v967, %v965
    %v1076 = vpack.c.b16 %v968, %v966
    %v1077 = vpack.c.b16 %v971, %v969
    %v1078 = vpack.c.b16 %v972, %v970
    %v1079 = vpack.c.b16 %v975, %v973
    %v1080 = vpack.c.b16 %v976, %v974
    %v1081 = vpack.c.b16 %v979, %v977
    %v1082 = vpack.c.b16 %v980, %v978
    %v1083 = vpack.c.b16 %v983, %v981
    %v1084 = vpack.c.b16 %v984, %v982
    %v1085 = vpack.c.b16 %v987, %v985
    %v1086 = vpack.c.b16 %v988, %v986
    %v1087 = vpack.c.b16 %v991, %v989
    %v1088 = vpack.c.b16 %v992, %v990
    %v1089 = vpack.c.b16 %v995, %v993
    %v1090 = vpack.c.b16 %v996, %v994
    %v1091 = vpack.c.b16 %v999, %v997
    %v1092 = vpack.c.b16 %v1000, %v998
    %v1093 = vpack.c.b16 %v1003, %v1001
    %v1094 = vpack.c.b16 %v1004, %v1002
    %v1095 = vpack.c.b16 %v1007, %v1005
    %v1096 = vpack.c.b16 %v1008, %v1006
    %v1097 = vpack.c.b16 %v1011, %v1009
    %v1098 = vpack.c.b16 %v1012, %v1010
    %v1099 = vpack.c.b16 %v1015, %v1013
    %v1100 = vpack.c.b16 %v1016, %v1014
    %v1101 = vpack.c.b16 %v1019, %v1017
    %v1102 = vpack.c.b16 %v1020, %v1018
    %v1103 = vpack.c.b16 %v1023, %v1021
    %v1104 = vpack.c.b16 %v1024, %v1022
    %v1105 = vpack.c.b16 %v1027, %v1025
    %v1106 = vpack.c.b16 %v1028, %v1026
    %v1107 = vpack.c.b16 %v1031, %v1029
    %v1108 = vpack.c.b16 %v1032, %v1030
    %v1109 = vpack.c.b16 %v1035, %v1033
    %v1110 = vpack.c.b16 %v1036, %v1034
    %v1111 = vpack.c.b16 %v1039, %v1037
    %v1112 = vpack.c.b16 %v1040, %v1038
    %v1113 = vpack.c.b16 %v1043, %v1041
    %v1114 = vpack.c.b16 %v1044, %v1042
    %v1115 = vpack.c.b16 %v1047, %v1045
    %v1116 = vpack.c.b16 %v1048, %v1046
    %v1117 = vpack.c.b16 %v1051, %v1049
    %v1118 = vpack.c.b16 %v1052, %v1050
    %v1119 = vpack.c.b16 %v1055, %v1053
    %v1120 = vpack.c.b16 %v1056, %v1054
    %1185 = vmatprep.subr.bf16.mxu0 %v1058
    %1186 = vmatpush1.bf16.msra.mxu0 %v1057
    %1187 = vmatprep.subr.bf16.mxu0 %v1060
    %1188 = vmatpush1.bf16.msra.mxu0 %v1059
    %1189 = vmatprep.subr.bf16.mxu0 %v1062
    %1190 = vmatpush1.bf16.msra.mxu0 %v1061
    %1191 = vmatprep.subr.bf16.mxu0 %v1064
    %1192 = vmatpush1.bf16.msra.mxu0 %v1063
    %1193 = vmatprep.subr.bf16.mxu0 %v1066
    %1194 = vmatpush1.bf16.msra.mxu0 %v1065
    %1195 = vmatprep.subr.bf16.mxu0 %v1068
    %1196 = vmatpush1.bf16.msra.mxu0 %v1067
    %1197 = vmatprep.subr.bf16.mxu0 %v1070
    %1198 = vmatpush1.bf16.msra.mxu0 %v1069
    %1199 = vmatprep.subr.bf16.mxu0 %v1072
    %1200 = vmatpush1.bf16.msra.mxu0 %v1071
    %1201 = vmatprep.subr.bf16.mxu0 %v1074
    %1202 = vmatpush1.bf16.msra.mxu0 %v1073
    %1203 = vmatprep.subr.bf16.mxu0 %v1076
    %1204 = vmatpush1.bf16.msra.mxu0 %v1075
    %1205 = vmatprep.subr.bf16.mxu0 %v1078
    %1206 = vmatpush1.bf16.msra.mxu0 %v1077
    %1207 = vmatprep.subr.bf16.mxu0 %v1080
    %1208 = vmatpush1.bf16.msra.mxu0 %v1079
    %1209 = vmatprep.subr.bf16.mxu0 %v1082
    %1210 = vmatpush1.bf16.msra.mxu0 %v1081
    %1211 = vmatprep.subr.bf16.mxu0 %v1084
    %1212 = vmatpush1.bf16.msra.mxu0 %v1083
    %1213 = vmatprep.subr.bf16.mxu0 %v1086
    %1214 = vmatpush1.bf16.msra.mxu0 %v1085
    %1215 = vmatprep.subr.bf16.mxu0 %v1088
    %1216 = vmatpush1.bf16.msra.mxu0 %v1087
    %1217 = vmatprep.mubr.bf16.mxu0 %v786
    %1218 = vmatmul.mubr.bf16.gmra.mrb[0].mxu0 %v785
    %v1219 = vpop.f32.mrb[0].mxu0
    %v1220 = vadd.f32 %v858, %v1219
    %v1221 = vpop.f32.mrb[0].mxu0
    %v1222 = vadd.f32 %v862, %v1221
    %v1223 = vpop.f32.mrb[0].mxu0
    %v1224 = vpop.f32.mrb[0].mxu0
    %1225 = vdwg.mxu0
    %1226 = vmatprep.subr.bf16.mxu0 %v1090
    %1227 = vmatpush1.bf16.msra.mxu0 %v1089
    %1228 = vmatprep.subr.bf16.mxu0 %v1092
    %1229 = vmatpush1.bf16.msra.mxu0 %v1091
    %1230 = vmatprep.subr.bf16.mxu0 %v1094
    %1231 = vmatpush1.bf16.msra.mxu0 %v1093
    %1232 = vmatprep.subr.bf16.mxu0 %v1096
    %1233 = vmatpush1.bf16.msra.mxu0 %v1095
    %1234 = vmatprep.subr.bf16.mxu0 %v1098
    %1235 = vmatpush1.bf16.msra.mxu0 %v1097
    %1236 = vmatprep.subr.bf16.mxu0 %v1100
    %1237 = vmatpush1.bf16.msra.mxu0 %v1099
    %1238 = vmatprep.subr.bf16.mxu0 %v1102
    %1239 = vmatpush1.bf16.msra.mxu0 %v1101
    %1240 = vmatprep.subr.bf16.mxu0 %v1104
    %1241 = vmatpush1.bf16.msra.mxu0 %v1103
    %1242 = vmatprep.subr.bf16.mxu0 %v1106
    %1243 = vmatpush1.bf16.msra.mxu0 %v1105
    %1244 = vmatprep.subr.bf16.mxu0 %v1108
    %1245 = vmatpush1.bf16.msra.mxu0 %v1107
    %1246 = vmatprep.subr.bf16.mxu0 %v1110
    %1247 = vmatpush1.bf16.msra.mxu0 %v1109
    %1248 = vmatprep.subr.bf16.mxu0 %v1112
    %1249 = vmatpush1.bf16.msra.mxu0 %v1111
    %1250 = vmatprep.subr.bf16.mxu0 %v1114
    %1251 = vmatpush1.bf16.msra.mxu0 %v1113
    %1252 = vmatprep.subr.bf16.mxu0 %v1116
    %1253 = vmatpush1.bf16.msra.mxu0 %v1115
    %1254 = vmatprep.subr.bf16.mxu0 %v1118
    %1255 = vmatpush1.bf16.msra.mxu0 %v1117
    %1256 = vmatprep.subr.bf16.mxu0 %v1120
    %1257 = vmatpush1.bf16.msra.mxu0 %v1119
    %1258 = vmatprep.mubr.bf16.mxu0 %v788
    %1259 = vmatmul.mubr.bf16.gmra.mrb[0].mxu0 %v787
    %v1260 = vpop.f32.mrb[0].mxu0
    %v1261 = vadd.f32 %v1220, %v1260
    %v1262 = vpop.f32.mrb[0].mxu0
    %v1263 = vadd.f32 %v1222, %v1262
    %v1264 = vpop.f32.mrb[0].mxu0
    %v1265 = vpop.f32.mrb[0].mxu0
    %1266 = vdwg.mxu0
    %v1267 = vtanh.pop %v1261
    %v1268 = vtanh.pop %v1263
    %v1269 = vpack.c.bf16 %v1267, %v1267
    %v1270 = vpack.c.bf16 %v1268, %v1268
    %v1271 = vld [vmem:[#allocation9] sm:$0xff]
    %v1272 = vld [vmem:[#allocation9 + $0x8] sm:$0xff]
    %v1273 = vld [vmem:[#allocation9 + $0x10] sm:$0xff]
    %v1274 = vld [vmem:[#allocation9 + $0x18] sm:$0xff]
    %v1275 = vld [vmem:[#allocation9 + $0x20] sm:$0xff]
    %v1276 = vld [vmem:[#allocation9 + $0x28] sm:$0xff]
    %v1277 = vld [vmem:[#allocation9 + $0x30] sm:$0xff]
    %v1278 = vld [vmem:[#allocation9 + $0x38] sm:$0xff]
    %v1279 = vld [vmem:[#allocation9 + $0x40] sm:$0xff]
    %v1280 = vld [vmem:[#allocation9 + $0x48] sm:$0xff]
    %v1281 = vld [vmem:[#allocation9 + $0x50] sm:$0xff]
    %v1282 = vld [vmem:[#allocation9 + $0x58] sm:$0xff]
    %v1283 = vld [vmem:[#allocation9 + $0x60] sm:$0xff]
    %v1284 = vld [vmem:[#allocation9 + $0x68] sm:$0xff]
    %v1285 = vld [vmem:[#allocation9 + $0x70] sm:$0xff]
    %v1286 = vld [vmem:[#allocation9 + $0x78] sm:$0xff]
    %v1287 = vld [vmem:[#allocation9 + $0x80] sm:$0xff]
    %v1288 = vld [vmem:[#allocation9 + $0x88] sm:$0xff]
    %v1289 = vld [vmem:[#allocation9 + $0x90] sm:$0xff]
    %v1290 = vld [vmem:[#allocation9 + $0x98] sm:$0xff]
    %v1291 = vld [vmem:[#allocation9 + $0xa0] sm:$0xff]
    %v1292 = vld [vmem:[#allocation9 + $0xa8] sm:$0xff]
    %v1293 = vld [vmem:[#allocation9 + $0xb0] sm:$0xff]
    %v1294 = vld [vmem:[#allocation9 + $0xb8] sm:$0xff]
    %v1295 = vld [vmem:[#allocation9 + $0xc0] sm:$0xff]
    %v1296 = vld [vmem:[#allocation9 + $0xc8] sm:$0xff]
    %v1297 = vld [vmem:[#allocation9 + $0xd0] sm:$0xff]
    %v1298 = vld [vmem:[#allocation9 + $0xd8] sm:$0xff]
    %v1299 = vld [vmem:[#allocation9 + $0xe0] sm:$0xff]
    %v1300 = vld [vmem:[#allocation9 + $0xe8] sm:$0xff]
    %v1301 = vld [vmem:[#allocation9 + $0xf0] sm:$0xff]
    %v1302 = vld [vmem:[#allocation9 + $0xf8] sm:$0xff]
    %v1303 = vld [vmem:[#allocation9 + $0x100] sm:$0xff]
    %v1304 = vld [vmem:[#allocation9 + $0x108] sm:$0xff]
    %v1305 = vld [vmem:[#allocation9 + $0x110] sm:$0xff]
    %v1306 = vld [vmem:[#allocation9 + $0x118] sm:$0xff]
    %v1307 = vld [vmem:[#allocation9 + $0x120] sm:$0xff]
    %v1308 = vld [vmem:[#allocation9 + $0x128] sm:$0xff]
    %v1309 = vld [vmem:[#allocation9 + $0x130] sm:$0xff]
    %v1310 = vld [vmem:[#allocation9 + $0x138] sm:$0xff]
    %v1311 = vld [vmem:[#allocation9 + $0x140] sm:$0xff]
    %v1312 = vld [vmem:[#allocation9 + $0x148] sm:$0xff]
    %v1313 = vld [vmem:[#allocation9 + $0x150] sm:$0xff]
    %v1314 = vld [vmem:[#allocation9 + $0x158] sm:$0xff]
    %v1315 = vld [vmem:[#allocation9 + $0x160] sm:$0xff]
    %v1316 = vld [vmem:[#allocation9 + $0x168] sm:$0xff]
    %v1317 = vld [vmem:[#allocation9 + $0x170] sm:$0xff]
    %v1318 = vld [vmem:[#allocation9 + $0x178] sm:$0xff]
    %v1319 = vld [vmem:[#allocation9 + $0x180] sm:$0xff]
    %v1320 = vld [vmem:[#allocation9 + $0x188] sm:$0xff]
    %v1321 = vld [vmem:[#allocation9 + $0x190] sm:$0xff]
    %v1322 = vld [vmem:[#allocation9 + $0x198] sm:$0xff]
    %v1323 = vld [vmem:[#allocation9 + $0x1a0] sm:$0xff]
    %v1324 = vld [vmem:[#allocation9 + $0x1a8] sm:$0xff]
    %v1325 = vld [vmem:[#allocation9 + $0x1b0] sm:$0xff]
    %v1326 = vld [vmem:[#allocation9 + $0x1b8] sm:$0xff]
    %v1327 = vld [vmem:[#allocation9 + $0x1c0] sm:$0xff]
    %v1328 = vld [vmem:[#allocation9 + $0x1c8] sm:$0xff]
    %v1329 = vld [vmem:[#allocation9 + $0x1d0] sm:$0xff]
    %v1330 = vld [vmem:[#allocation9 + $0x1d8] sm:$0xff]
    %v1331 = vld [vmem:[#allocation9 + $0x1e0] sm:$0xff]
    %v1332 = vld [vmem:[#allocation9 + $0x1e8] sm:$0xff]
    %v1333 = vld [vmem:[#allocation9 + $0x1f0] sm:$0xff]
    %v1334 = vld [vmem:[#allocation9 + $0x1f8] sm:$0xff]
    %v1335 = vld [vmem:[%s8] sm:$0xf]
    %v1337 = vlaneseq
    %v1338 = vshrl.u32 %v1337, 7
    %v1339 = vsub.s32 0, %v1338
    %v1340 = vrot.slane %v1335, %v1339
    %v1341 = vlaneseq
    %v1342 = vshrl.u32 %v1341, 7
    %v1343 = vsub.s32 1, %v1342
    %v1344 = vrot.slane %v1335, %v1343
    %v1345 = vlaneseq
    %v1346 = vshrl.u32 %v1345, 7
    %v1347 = vsub.s32 2, %v1346
    %v1348 = vrot.slane %v1335, %v1347
    %v1349 = vlaneseq
    %v1350 = vshrl.u32 %v1349, 7
    %v1351 = vsub.s32 3, %v1350
    %v1352 = vrot.slane %v1335, %v1351
    %v1421 = vunpack.c.l.b16 %v1271
    %v1422 = vunpack.c.h.b16 %v1271
    %v1423 = vunpack.c.l.b16 %v1272
    %v1424 = vunpack.c.h.b16 %v1272
    %v1425 = vunpack.c.l.b16 %v1273
    %v1426 = vunpack.c.h.b16 %v1273
    %v1427 = vunpack.c.l.b16 %v1274
    %v1428 = vunpack.c.h.b16 %v1274
    %v1429 = vunpack.c.l.b16 %v1275
    %v1430 = vunpack.c.h.b16 %v1275
    %v1431 = vunpack.c.l.b16 %v1276
    %v1432 = vunpack.c.h.b16 %v1276
    %v1433 = vunpack.c.l.b16 %v1277
    %v1434 = vunpack.c.h.b16 %v1277
    %v1435 = vunpack.c.l.b16 %v1278
    %v1436 = vunpack.c.h.b16 %v1278
    %v1437 = vunpack.c.l.b16 %v1279
    %v1438 = vunpack.c.h.b16 %v1279
    %v1439 = vunpack.c.l.b16 %v1280
    %v1440 = vunpack.c.h.b16 %v1280
    %v1441 = vunpack.c.l.b16 %v1281
    %v1442 = vunpack.c.h.b16 %v1281
    %v1443 = vunpack.c.l.b16 %v1282
    %v1444 = vunpack.c.h.b16 %v1282
    %v1445 = vunpack.c.l.b16 %v1283
    %v1446 = vunpack.c.h.b16 %v1283
    %v1447 = vunpack.c.l.b16 %v1284
    %v1448 = vunpack.c.h.b16 %v1284
    %v1449 = vunpack.c.l.b16 %v1285
    %v1450 = vunpack.c.h.b16 %v1285
    %v1451 = vunpack.c.l.b16 %v1286
    %v1452 = vunpack.c.h.b16 %v1286
    %v1453 = vunpack.c.l.b16 %v1287
    %v1454 = vunpack.c.h.b16 %v1287
    %v1455 = vunpack.c.l.b16 %v1288
    %v1456 = vunpack.c.h.b16 %v1288
    %v1457 = vunpack.c.l.b16 %v1289
    %v1458 = vunpack.c.h.b16 %v1289
    %v1459 = vunpack.c.l.b16 %v1290
    %v1460 = vunpack.c.h.b16 %v1290
    %v1461 = vunpack.c.l.b16 %v1291
    %v1462 = vunpack.c.h.b16 %v1291
    %v1463 = vunpack.c.l.b16 %v1292
    %v1464 = vunpack.c.h.b16 %v1292
    %v1465 = vunpack.c.l.b16 %v1293
    %v1466 = vunpack.c.h.b16 %v1293
    %v1467 = vunpack.c.l.b16 %v1294
    %v1468 = vunpack.c.h.b16 %v1294
    %v1469 = vunpack.c.l.b16 %v1295
    %v1470 = vunpack.c.h.b16 %v1295
    %v1471 = vunpack.c.l.b16 %v1296
    %v1472 = vunpack.c.h.b16 %v1296
    %v1473 = vunpack.c.l.b16 %v1297
    %v1474 = vunpack.c.h.b16 %v1297
    %v1475 = vunpack.c.l.b16 %v1298
    %v1476 = vunpack.c.h.b16 %v1298
    %v1477 = vunpack.c.l.b16 %v1299
    %v1478 = vunpack.c.h.b16 %v1299
    %v1479 = vunpack.c.l.b16 %v1300
    %v1480 = vunpack.c.h.b16 %v1300
    %v1481 = vunpack.c.l.b16 %v1301
    %v1482 = vunpack.c.h.b16 %v1301
    %v1483 = vunpack.c.l.b16 %v1302
    %v1484 = vunpack.c.h.b16 %v1302
    %v1485 = vunpack.c.l.b16 %v1303
    %v1486 = vunpack.c.h.b16 %v1303
    %v1487 = vunpack.c.l.b16 %v1304
    %v1488 = vunpack.c.h.b16 %v1304
    %v1489 = vunpack.c.l.b16 %v1305
    %v1490 = vunpack.c.h.b16 %v1305
    %v1491 = vunpack.c.l.b16 %v1306
    %v1492 = vunpack.c.h.b16 %v1306
    %v1493 = vunpack.c.l.b16 %v1307
    %v1494 = vunpack.c.h.b16 %v1307
    %v1495 = vunpack.c.l.b16 %v1308
    %v1496 = vunpack.c.h.b16 %v1308
    %v1497 = vunpack.c.l.b16 %v1309
    %v1498 = vunpack.c.h.b16 %v1309
    %v1499 = vunpack.c.l.b16 %v1310
    %v1500 = vunpack.c.h.b16 %v1310
    %v1501 = vunpack.c.l.b16 %v1311
    %v1502 = vunpack.c.h.b16 %v1311
    %v1503 = vunpack.c.l.b16 %v1312
    %v1504 = vunpack.c.h.b16 %v1312
    %v1505 = vunpack.c.l.b16 %v1313
    %v1506 = vunpack.c.h.b16 %v1313
    %v1507 = vunpack.c.l.b16 %v1314
    %v1508 = vunpack.c.h.b16 %v1314
    %v1509 = vunpack.c.l.b16 %v1315
    %v1510 = vunpack.c.h.b16 %v1315
    %v1511 = vunpack.c.l.b16 %v1316
    %v1512 = vunpack.c.h.b16 %v1316
    %v1513 = vunpack.c.l.b16 %v1317
    %v1514 = vunpack.c.h.b16 %v1317
    %v1515 = vunpack.c.l.b16 %v1318
    %v1516 = vunpack.c.h.b16 %v1318
    %v1517 = vunpack.c.l.b16 %v1319
    %v1518 = vunpack.c.h.b16 %v1319
    %v1519 = vunpack.c.l.b16 %v1320
    %v1520 = vunpack.c.h.b16 %v1320
    %v1521 = vunpack.c.l.b16 %v1321
    %v1522 = vunpack.c.h.b16 %v1321
    %v1523 = vunpack.c.l.b16 %v1322
    %v1524 = vunpack.c.h.b16 %v1322
    %v1525 = vunpack.c.l.b16 %v1323
    %v1526 = vunpack.c.h.b16 %v1323
    %v1527 = vunpack.c.l.b16 %v1324
    %v1528 = vunpack.c.h.b16 %v1324
    %v1529 = vunpack.c.l.b16 %v1325
    %v1530 = vunpack.c.h.b16 %v1325
    %v1531 = vunpack.c.l.b16 %v1326
    %v1532 = vunpack.c.h.b16 %v1326
    %v1533 = vunpack.c.l.b16 %v1327
    %v1534 = vunpack.c.h.b16 %v1327
    %v1535 = vunpack.c.l.b16 %v1328
    %v1536 = vunpack.c.h.b16 %v1328
    %v1537 = vunpack.c.l.b16 %v1329
    %v1538 = vunpack.c.h.b16 %v1329
    %v1539 = vunpack.c.l.b16 %v1330
    %v1540 = vunpack.c.h.b16 %v1330
    %v1541 = vunpack.c.l.b16 %v1331
    %v1542 = vunpack.c.h.b16 %v1331
    %v1543 = vunpack.c.l.b16 %v1332
    %v1544 = vunpack.c.h.b16 %v1332
    %v1545 = vunpack.c.l.b16 %v1333
    %v1546 = vunpack.c.h.b16 %v1333
    %v1547 = vunpack.c.l.b16 %v1334
    %v1548 = vunpack.c.h.b16 %v1334
    %v1549 = vpack.c.b16 %v1425, %v1421
    %v1550 = vpack.c.b16 %v1426, %v1422
    %v1551 = vpack.c.b16 %v1427, %v1423
    %v1552 = vpack.c.b16 %v1428, %v1424
    %v1553 = vpack.c.b16 %v1433, %v1429
    %v1554 = vpack.c.b16 %v1434, %v1430
    %v1555 = vpack.c.b16 %v1435, %v1431
    %v1556 = vpack.c.b16 %v1436, %v1432
    %v1557 = vpack.c.b16 %v1441, %v1437
    %v1558 = vpack.c.b16 %v1442, %v1438
    %v1559 = vpack.c.b16 %v1443, %v1439
    %v1560 = vpack.c.b16 %v1444, %v1440
    %v1561 = vpack.c.b16 %v1449, %v1445
    %v1562 = vpack.c.b16 %v1450, %v1446
    %v1563 = vpack.c.b16 %v1451, %v1447
    %v1564 = vpack.c.b16 %v1452, %v1448
    %v1565 = vpack.c.b16 %v1457, %v1453
    %v1566 = vpack.c.b16 %v1458, %v1454
    %v1567 = vpack.c.b16 %v1459, %v1455
    %v1568 = vpack.c.b16 %v1460, %v1456
    %v1569 = vpack.c.b16 %v1465, %v1461
    %v1570 = vpack.c.b16 %v1466, %v1462
    %v1571 = vpack.c.b16 %v1467, %v1463
    %v1572 = vpack.c.b16 %v1468, %v1464
    %v1573 = vpack.c.b16 %v1473, %v1469
    %v1574 = vpack.c.b16 %v1474, %v1470
    %v1575 = vpack.c.b16 %v1475, %v1471
    %v1576 = vpack.c.b16 %v1476, %v1472
    %v1577 = vpack.c.b16 %v1481, %v1477
    %v1578 = vpack.c.b16 %v1482, %v1478
    %v1579 = vpack.c.b16 %v1483, %v1479
    %v1580 = vpack.c.b16 %v1484, %v1480
    %v1581 = vpack.c.b16 %v1489, %v1485
    %v1582 = vpack.c.b16 %v1490, %v1486
    %v1583 = vpack.c.b16 %v1491, %v1487
    %v1584 = vpack.c.b16 %v1492, %v1488
    %v1585 = vpack.c.b16 %v1497, %v1493
    %v1586 = vpack.c.b16 %v1498, %v1494
    %v1587 = vpack.c.b16 %v1499, %v1495
    %v1588 = vpack.c.b16 %v1500, %v1496
    %v1589 = vpack.c.b16 %v1505, %v1501
    %v1590 = vpack.c.b16 %v1506, %v1502
    %v1591 = vpack.c.b16 %v1507, %v1503
    %v1592 = vpack.c.b16 %v1508, %v1504
    %v1593 = vpack.c.b16 %v1513, %v1509
    %v1594 = vpack.c.b16 %v1514, %v1510
    %v1595 = vpack.c.b16 %v1515, %v1511
    %v1596 = vpack.c.b16 %v1516, %v1512
    %v1597 = vpack.c.b16 %v1521, %v1517
    %v1598 = vpack.c.b16 %v1522, %v1518
    %v1599 = vpack.c.b16 %v1523, %v1519
    %v1600 = vpack.c.b16 %v1524, %v1520
    %v1601 = vpack.c.b16 %v1529, %v1525
    %v1602 = vpack.c.b16 %v1530, %v1526
    %v1603 = vpack.c.b16 %v1531, %v1527
    %v1604 = vpack.c.b16 %v1532, %v1528
    %v1605 = vpack.c.b16 %v1537, %v1533
    %v1606 = vpack.c.b16 %v1538, %v1534
    %v1607 = vpack.c.b16 %v1539, %v1535
    %v1608 = vpack.c.b16 %v1540, %v1536
    %v1609 = vpack.c.b16 %v1545, %v1541
    %v1610 = vpack.c.b16 %v1546, %v1542
    %v1611 = vpack.c.b16 %v1547, %v1543
    %v1612 = vpack.c.b16 %v1548, %v1544
    %1677 = vmatprep.subr.bf16.mxu0 %v1550
    %1678 = vmatpush1.bf16.msra.mxu0 %v1549
    %1679 = vmatprep.subr.bf16.mxu0 %v1554
    %1680 = vmatpush1.bf16.msra.mxu0 %v1553
    %1681 = vmatprep.subr.bf16.mxu0 %v1558
    %1682 = vmatpush1.bf16.msra.mxu0 %v1557
    %1683 = vmatprep.subr.bf16.mxu0 %v1562
    %1684 = vmatpush1.bf16.msra.mxu0 %v1561
    %1685 = vmatprep.subr.bf16.mxu0 %v1566
    %1686 = vmatpush1.bf16.msra.mxu0 %v1565
    %1687 = vmatprep.subr.bf16.mxu0 %v1570
    %1688 = vmatpush1.bf16.msra.mxu0 %v1569
    %1689 = vmatprep.subr.bf16.mxu0 %v1574
    %1690 = vmatpush1.bf16.msra.mxu0 %v1573
    %1691 = vmatprep.subr.bf16.mxu0 %v1578
    %1692 = vmatpush1.bf16.msra.mxu0 %v1577
    %1693 = vmatprep.subr.bf16.mxu0 %v1582
    %1694 = vmatpush1.bf16.msra.mxu0 %v1581
    %1695 = vmatprep.subr.bf16.mxu0 %v1586
    %1696 = vmatpush1.bf16.msra.mxu0 %v1585
    %1697 = vmatprep.subr.bf16.mxu0 %v1590
    %1698 = vmatpush1.bf16.msra.mxu0 %v1589
    %1699 = vmatprep.subr.bf16.mxu0 %v1594
    %1700 = vmatpush1.bf16.msra.mxu0 %v1593
    %1701 = vmatprep.subr.bf16.mxu0 %v1598
    %1702 = vmatpush1.bf16.msra.mxu0 %v1597
    %1703 = vmatprep.subr.bf16.mxu0 %v1602
    %1704 = vmatpush1.bf16.msra.mxu0 %v1601
    %1705 = vmatprep.subr.bf16.mxu0 %v1606
    %1706 = vmatpush1.bf16.msra.mxu0 %v1605
    %1707 = vmatprep.subr.bf16.mxu0 %v1610
    %1708 = vmatpush1.bf16.msra.mxu0 %v1609
    %1709 = vmatprep.mubr.bf16.mxu0 %v1270
    %1710 = vmatmul.mubr.bf16.gmra.mrb[0].mxu0 %v1269
    %v1711 = vpop.f32.mrb[0].mxu0
    %v1712 = vadd.f32 %v1340, %v1711
    %v1713 = vpop.f32.mrb[0].mxu0
    %v1714 = vadd.f32 %v1344, %v1713
    %v1715 = vpop.f32.mrb[0].mxu0
    %v1716 = vpop.f32.mrb[0].mxu0
    %1717 = vdwg.mxu0
    %1718 = vmatprep.subr.bf16.mxu0 %v1552
    %1719 = vmatpush1.bf16.msra.mxu0 %v1551
    %1720 = vmatprep.subr.bf16.mxu0 %v1556
    %1721 = vmatpush1.bf16.msra.mxu0 %v1555
    %1722 = vmatprep.subr.bf16.mxu0 %v1560
    %1723 = vmatpush1.bf16.msra.mxu0 %v1559
    %1724 = vmatprep.subr.bf16.mxu0 %v1564
    %1725 = vmatpush1.bf16.msra.mxu0 %v1563
    %1726 = vmatprep.subr.bf16.mxu0 %v1568
    %1727 = vmatpush1.bf16.msra.mxu0 %v1567
    %1728 = vmatprep.subr.bf16.mxu0 %v1572
    %1729 = vmatpush1.bf16.msra.mxu0 %v1571
    %1730 = vmatprep.subr.bf16.mxu0 %v1576
    %1731 = vmatpush1.bf16.msra.mxu0 %v1575
    %1732 = vmatprep.subr.bf16.mxu0 %v1580
    %1733 = vmatpush1.bf16.msra.mxu0 %v1579
    %1734 = vmatprep.subr.bf16.mxu0 %v1584
    %1735 = vmatpush1.bf16.msra.mxu0 %v1583
    %1736 = vmatprep.subr.bf16.mxu0 %v1588
    %1737 = vmatpush1.bf16.msra.mxu0 %v1587
    %1738 = vmatprep.subr.bf16.mxu0 %v1592
    %1739 = vmatpush1.bf16.msra.mxu0 %v1591
    %1740 = vmatprep.subr.bf16.mxu0 %v1596
    %1741 = vmatpush1.bf16.msra.mxu0 %v1595
    %1742 = vmatprep.subr.bf16.mxu0 %v1600
    %1743 = vmatpush1.bf16.msra.mxu0 %v1599
    %1744 = vmatprep.subr.bf16.mxu0 %v1604
    %1745 = vmatpush1.bf16.msra.mxu0 %v1603
    %1746 = vmatprep.subr.bf16.mxu0 %v1608
    %1747 = vmatpush1.bf16.msra.mxu0 %v1607
    %1748 = vmatprep.subr.bf16.mxu0 %v1612
    %1749 = vmatpush1.bf16.msra.mxu0 %v1611
    %1750 = vmatprep.mubr.bf16.mxu0 %v1270
    %1751 = vmatmul.mubr.bf16.gmra.mrb[0].mxu0 %v1269
    %v1752 = vpop.f32.mrb[0].mxu0
    %v1753 = vadd.f32 %v1348, %v1752
    %v1754 = vpop.f32.mrb[0].mxu0
    %v1755 = vadd.f32 %v1352, %v1754
    %v1756 = vpop.f32.mrb[0].mxu0
    %v1757 = vpop.f32.mrb[0].mxu0
    %1758 = vdwg.mxu0
    %vm1759 = vcmp.ge.f32.partialorder %v1712, 0.0
    %vm1760 = vcmp.ge.f32.partialorder %v1714, 0.0
    %vm1761 = vcmp.ge.f32.partialorder %v1753, 0.0
    %vm1762 = vcmp.ge.f32.partialorder %v1755, 0.0
    %v1763 = vmul.f32 %v1712, 0.2
    %v1764 = vmul.f32 %v1714, 0.2
    %v1765 = vmul.f32 %v1753, 0.2
    %v1766 = vmul.f32 %v1755, 0.2
    %v1767 = vsel %vm1759, %v1712, %v1763
    %v1768 = vsel %vm1760, %v1714, %v1764
    %v1769 = vsel %vm1761, %v1753, %v1765
    %v1770 = vsel %vm1762, %v1755, %v1766
    %v1771 = vpack.c.bf16 %v1767, %v1767
    %v1772 = vpack.c.bf16 %v1768, %v1768
    %v1773 = vpack.c.bf16 %v1769, %v1769
    %v1774 = vpack.c.bf16 %v1770, %v1770
    %v1775 = vld [vmem:[#allocation10] sm:$0xff]
    %v1776 = vld [vmem:[#allocation10 + $0x8] sm:$0xff]
    %v1777 = vld [vmem:[#allocation10 + $0x10] sm:$0xff]
    %v1778 = vld [vmem:[#allocation10 + $0x18] sm:$0xff]
    %v1779 = vld [vmem:[#allocation10 + $0x20] sm:$0xff]
    %v1780 = vld [vmem:[#allocation10 + $0x28] sm:$0xff]
    %v1781 = vld [vmem:[#allocation10 + $0x30] sm:$0xff]
    %v1782 = vld [vmem:[#allocation10 + $0x38] sm:$0xff]
    %v1783 = vld [vmem:[#allocation10 + $0x40] sm:$0xff]
    %v1784 = vld [vmem:[#allocation10 + $0x48] sm:$0xff]
    %v1785 = vld [vmem:[#allocation10 + $0x50] sm:$0xff]
    %v1786 = vld [vmem:[#allocation10 + $0x58] sm:$0xff]
    %v1787 = vld [vmem:[#allocation10 + $0x60] sm:$0xff]
    %v1788 = vld [vmem:[#allocation10 + $0x68] sm:$0xff]
    %v1789 = vld [vmem:[#allocation10 + $0x70] sm:$0xff]
    %v1790 = vld [vmem:[#allocation10 + $0x78] sm:$0xff]
    %v1791 = vld [vmem:[#allocation10 + $0x80] sm:$0xff]
    %v1792 = vld [vmem:[#allocation10 + $0x88] sm:$0xff]
    %v1793 = vld [vmem:[#allocation10 + $0x90] sm:$0xff]
    %v1794 = vld [vmem:[#allocation10 + $0x98] sm:$0xff]
    %v1795 = vld [vmem:[#allocation10 + $0xa0] sm:$0xff]
    %v1796 = vld [vmem:[#allocation10 + $0xa8] sm:$0xff]
    %v1797 = vld [vmem:[#allocation10 + $0xb0] sm:$0xff]
    %v1798 = vld [vmem:[#allocation10 + $0xb8] sm:$0xff]
    %v1799 = vld [vmem:[#allocation10 + $0xc0] sm:$0xff]
    %v1800 = vld [vmem:[#allocation10 + $0xc8] sm:$0xff]
    %v1801 = vld [vmem:[#allocation10 + $0xd0] sm:$0xff]
    %v1802 = vld [vmem:[#allocation10 + $0xd8] sm:$0xff]
    %v1803 = vld [vmem:[#allocation10 + $0xe0] sm:$0xff]
    %v1804 = vld [vmem:[#allocation10 + $0xe8] sm:$0xff]
    %v1805 = vld [vmem:[#allocation10 + $0xf0] sm:$0xff]
    %v1806 = vld [vmem:[#allocation10 + $0xf8] sm:$0xff]
    %v1807 = vld [vmem:[#allocation10 + $0x100] sm:$0xff]
    %v1808 = vld [vmem:[#allocation10 + $0x108] sm:$0xff]
    %v1809 = vld [vmem:[#allocation10 + $0x110] sm:$0xff]
    %v1810 = vld [vmem:[#allocation10 + $0x118] sm:$0xff]
    %v1811 = vld [vmem:[#allocation10 + $0x120] sm:$0xff]
    %v1812 = vld [vmem:[#allocation10 + $0x128] sm:$0xff]
    %v1813 = vld [vmem:[#allocation10 + $0x130] sm:$0xff]
    %v1814 = vld [vmem:[#allocation10 + $0x138] sm:$0xff]
    %v1815 = vld [vmem:[#allocation10 + $0x140] sm:$0xff]
    %v1816 = vld [vmem:[#allocation10 + $0x148] sm:$0xff]
    %v1817 = vld [vmem:[#allocation10 + $0x150] sm:$0xff]
    %v1818 = vld [vmem:[#allocation10 + $0x158] sm:$0xff]
    %v1819 = vld [vmem:[#allocation10 + $0x160] sm:$0xff]
    %v1820 = vld [vmem:[#allocation10 + $0x168] sm:$0xff]
    %v1821 = vld [vmem:[#allocation10 + $0x170] sm:$0xff]
    %v1822 = vld [vmem:[#allocation10 + $0x178] sm:$0xff]
    %v1823 = vld [vmem:[#allocation10 + $0x180] sm:$0xff]
    %v1824 = vld [vmem:[#allocation10 + $0x188] sm:$0xff]
    %v1825 = vld [vmem:[#allocation10 + $0x190] sm:$0xff]
    %v1826 = vld [vmem:[#allocation10 + $0x198] sm:$0xff]
    %v1827 = vld [vmem:[#allocation10 + $0x1a0] sm:$0xff]
    %v1828 = vld [vmem:[#allocation10 + $0x1a8] sm:$0xff]
    %v1829 = vld [vmem:[#allocation10 + $0x1b0] sm:$0xff]
    %v1830 = vld [vmem:[#allocation10 + $0x1b8] sm:$0xff]
    %v1831 = vld [vmem:[#allocation10 + $0x1c0] sm:$0xff]
    %v1832 = vld [vmem:[#allocation10 + $0x1c8] sm:$0xff]
    %v1833 = vld [vmem:[#allocation10 + $0x1d0] sm:$0xff]
    %v1834 = vld [vmem:[#allocation10 + $0x1d8] sm:$0xff]
    %v1835 = vld [vmem:[#allocation10 + $0x1e0] sm:$0xff]
    %v1836 = vld [vmem:[#allocation10 + $0x1e8] sm:$0xff]
    %v1837 = vld [vmem:[#allocation10 + $0x1f0] sm:$0xff]
    %v1838 = vld [vmem:[#allocation10 + $0x1f8] sm:$0xff]
    %v1839 = vld [vmem:[%s10] sm:$0x3]
    %v1841 = vlaneseq
    %v1842 = vshrl.u32 %v1841, 7
    %v1843 = vsub.s32 0, %v1842
    %v1844 = vrot.slane %v1839, %v1843
    %v1845 = vlaneseq
    %v1846 = vshrl.u32 %v1845, 7
    %v1847 = vsub.s32 1, %v1846
    %v1848 = vrot.slane %v1839, %v1847
    %v1915 = vunpack.c.l.b16 %v1775
    %v1916 = vunpack.c.h.b16 %v1775
    %v1917 = vunpack.c.l.b16 %v1776
    %v1918 = vunpack.c.h.b16 %v1776
    %v1919 = vunpack.c.l.b16 %v1777
    %v1920 = vunpack.c.h.b16 %v1777
    %v1921 = vunpack.c.l.b16 %v1778
    %v1922 = vunpack.c.h.b16 %v1778
    %v1923 = vunpack.c.l.b16 %v1779
    %v1924 = vunpack.c.h.b16 %v1779
    %v1925 = vunpack.c.l.b16 %v1780
    %v1926 = vunpack.c.h.b16 %v1780
    %v1927 = vunpack.c.l.b16 %v1781
    %v1928 = vunpack.c.h.b16 %v1781
    %v1929 = vunpack.c.l.b16 %v1782
    %v1930 = vunpack.c.h.b16 %v1782
    %v1931 = vunpack.c.l.b16 %v1783
    %v1932 = vunpack.c.h.b16 %v1783
    %v1933 = vunpack.c.l.b16 %v1784
    %v1934 = vunpack.c.h.b16 %v1784
    %v1935 = vunpack.c.l.b16 %v1785
    %v1936 = vunpack.c.h.b16 %v1785
    %v1937 = vunpack.c.l.b16 %v1786
    %v1938 = vunpack.c.h.b16 %v1786
    %v1939 = vunpack.c.l.b16 %v1787
    %v1940 = vunpack.c.h.b16 %v1787
    %v1941 = vunpack.c.l.b16 %v1788
    %v1942 = vunpack.c.h.b16 %v1788
    %v1943 = vunpack.c.l.b16 %v1789
    %v1944 = vunpack.c.h.b16 %v1789
    %v1945 = vunpack.c.l.b16 %v1790
    %v1946 = vunpack.c.h.b16 %v1790
    %v1947 = vunpack.c.l.b16 %v1791
    %v1948 = vunpack.c.h.b16 %v1791
    %v1949 = vunpack.c.l.b16 %v1792
    %v1950 = vunpack.c.h.b16 %v1792
    %v1951 = vunpack.c.l.b16 %v1793
    %v1952 = vunpack.c.h.b16 %v1793
    %v1953 = vunpack.c.l.b16 %v1794
    %v1954 = vunpack.c.h.b16 %v1794
    %v1955 = vunpack.c.l.b16 %v1795
    %v1956 = vunpack.c.h.b16 %v1795
    %v1957 = vunpack.c.l.b16 %v1796
    %v1958 = vunpack.c.h.b16 %v1796
    %v1959 = vunpack.c.l.b16 %v1797
    %v1960 = vunpack.c.h.b16 %v1797
    %v1961 = vunpack.c.l.b16 %v1798
    %v1962 = vunpack.c.h.b16 %v1798
    %v1963 = vunpack.c.l.b16 %v1799
    %v1964 = vunpack.c.h.b16 %v1799
    %v1965 = vunpack.c.l.b16 %v1800
    %v1966 = vunpack.c.h.b16 %v1800
    %v1967 = vunpack.c.l.b16 %v1801
    %v1968 = vunpack.c.h.b16 %v1801
    %v1969 = vunpack.c.l.b16 %v1802
    %v1970 = vunpack.c.h.b16 %v1802
    %v1971 = vunpack.c.l.b16 %v1803
    %v1972 = vunpack.c.h.b16 %v1803
    %v1973 = vunpack.c.l.b16 %v1804
    %v1974 = vunpack.c.h.b16 %v1804
    %v1975 = vunpack.c.l.b16 %v1805
    %v1976 = vunpack.c.h.b16 %v1805
    %v1977 = vunpack.c.l.b16 %v1806
    %v1978 = vunpack.c.h.b16 %v1806
    %v1979 = vunpack.c.l.b16 %v1807
    %v1980 = vunpack.c.h.b16 %v1807
    %v1981 = vunpack.c.l.b16 %v1808
    %v1982 = vunpack.c.h.b16 %v1808
    %v1983 = vunpack.c.l.b16 %v1809
    %v1984 = vunpack.c.h.b16 %v1809
    %v1985 = vunpack.c.l.b16 %v1810
    %v1986 = vunpack.c.h.b16 %v1810
    %v1987 = vunpack.c.l.b16 %v1811
    %v1988 = vunpack.c.h.b16 %v1811
    %v1989 = vunpack.c.l.b16 %v1812
    %v1990 = vunpack.c.h.b16 %v1812
    %v1991 = vunpack.c.l.b16 %v1813
    %v1992 = vunpack.c.h.b16 %v1813
    %v1993 = vunpack.c.l.b16 %v1814
    %v1994 = vunpack.c.h.b16 %v1814
    %v1995 = vunpack.c.l.b16 %v1815
    %v1996 = vunpack.c.h.b16 %v1815
    %v1997 = vunpack.c.l.b16 %v1816
    %v1998 = vunpack.c.h.b16 %v1816
    %v1999 = vunpack.c.l.b16 %v1817
    %v2000 = vunpack.c.h.b16 %v1817
    %v2001 = vunpack.c.l.b16 %v1818
    %v2002 = vunpack.c.h.b16 %v1818
    %v2003 = vunpack.c.l.b16 %v1819
    %v2004 = vunpack.c.h.b16 %v1819
    %v2005 = vunpack.c.l.b16 %v1820
    %v2006 = vunpack.c.h.b16 %v1820
    %v2007 = vunpack.c.l.b16 %v1821
    %v2008 = vunpack.c.h.b16 %v1821
    %v2009 = vunpack.c.l.b16 %v1822
    %v2010 = vunpack.c.h.b16 %v1822
    %v2011 = vunpack.c.l.b16 %v1823
    %v2012 = vunpack.c.h.b16 %v1823
    %v2013 = vunpack.c.l.b16 %v1824
    %v2014 = vunpack.c.h.b16 %v1824
    %v2015 = vunpack.c.l.b16 %v1825
    %v2016 = vunpack.c.h.b16 %v1825
    %v2017 = vunpack.c.l.b16 %v1826
    %v2018 = vunpack.c.h.b16 %v1826
    %v2019 = vunpack.c.l.b16 %v1827
    %v2020 = vunpack.c.h.b16 %v1827
    %v2021 = vunpack.c.l.b16 %v1828
    %v2022 = vunpack.c.h.b16 %v1828
    %v2023 = vunpack.c.l.b16 %v1829
    %v2024 = vunpack.c.h.b16 %v1829
    %v2025 = vunpack.c.l.b16 %v1830
    %v2026 = vunpack.c.h.b16 %v1830
    %v2027 = vunpack.c.l.b16 %v1831
    %v2028 = vunpack.c.h.b16 %v1831
    %v2029 = vunpack.c.l.b16 %v1832
    %v2030 = vunpack.c.h.b16 %v1832
    %v2031 = vunpack.c.l.b16 %v1833
    %v2032 = vunpack.c.h.b16 %v1833
    %v2033 = vunpack.c.l.b16 %v1834
    %v2034 = vunpack.c.h.b16 %v1834
    %v2035 = vunpack.c.l.b16 %v1835
    %v2036 = vunpack.c.h.b16 %v1835
    %v2037 = vunpack.c.l.b16 %v1836
    %v2038 = vunpack.c.h.b16 %v1836
    %v2039 = vunpack.c.l.b16 %v1837
    %v2040 = vunpack.c.h.b16 %v1837
    %v2041 = vunpack.c.l.b16 %v1838
    %v2042 = vunpack.c.h.b16 %v1838
    %v2043 = vpack.c.b16 %v1917, %v1915
    %v2044 = vpack.c.b16 %v1918, %v1916
    %v2045 = vpack.c.b16 %v1921, %v1919
    %v2046 = vpack.c.b16 %v1922, %v1920
    %v2047 = vpack.c.b16 %v1925, %v1923
    %v2048 = vpack.c.b16 %v1926, %v1924
    %v2049 = vpack.c.b16 %v1929, %v1927
    %v2050 = vpack.c.b16 %v1930, %v1928
    %v2051 = vpack.c.b16 %v1933, %v1931
    %v2052 = vpack.c.b16 %v1934, %v1932
    %v2053 = vpack.c.b16 %v1937, %v1935
    %v2054 = vpack.c.b16 %v1938, %v1936
    %v2055 = vpack.c.b16 %v1941, %v1939
    %v2056 = vpack.c.b16 %v1942, %v1940
    %v2057 = vpack.c.b16 %v1945, %v1943
    %v2058 = vpack.c.b16 %v1946, %v1944
    %v2059 = vpack.c.b16 %v1949, %v1947
    %v2060 = vpack.c.b16 %v1950, %v1948
    %v2061 = vpack.c.b16 %v1953, %v1951
    %v2062 = vpack.c.b16 %v1954, %v1952
    %v2063 = vpack.c.b16 %v1957, %v1955
    %v2064 = vpack.c.b16 %v1958, %v1956
    %v2065 = vpack.c.b16 %v1961, %v1959
    %v2066 = vpack.c.b16 %v1962, %v1960
    %v2067 = vpack.c.b16 %v1965, %v1963
    %v2068 = vpack.c.b16 %v1966, %v1964
    %v2069 = vpack.c.b16 %v1969, %v1967
    %v2070 = vpack.c.b16 %v1970, %v1968
    %v2071 = vpack.c.b16 %v1973, %v1971
    %v2072 = vpack.c.b16 %v1974, %v1972
    %v2073 = vpack.c.b16 %v1977, %v1975
    %v2074 = vpack.c.b16 %v1978, %v1976
    %v2075 = vpack.c.b16 %v1981, %v1979
    %v2076 = vpack.c.b16 %v1982, %v1980
    %v2077 = vpack.c.b16 %v1985, %v1983
    %v2078 = vpack.c.b16 %v1986, %v1984
    %v2079 = vpack.c.b16 %v1989, %v1987
    %v2080 = vpack.c.b16 %v1990, %v1988
    %v2081 = vpack.c.b16 %v1993, %v1991
    %v2082 = vpack.c.b16 %v1994, %v1992
    %v2083 = vpack.c.b16 %v1997, %v1995
    %v2084 = vpack.c.b16 %v1998, %v1996
    %v2085 = vpack.c.b16 %v2001, %v1999
    %v2086 = vpack.c.b16 %v2002, %v2000
    %v2087 = vpack.c.b16 %v2005, %v2003
    %v2088 = vpack.c.b16 %v2006, %v2004
    %v2089 = vpack.c.b16 %v2009, %v2007
    %v2090 = vpack.c.b16 %v2010, %v2008
    %v2091 = vpack.c.b16 %v2013, %v2011
    %v2092 = vpack.c.b16 %v2014, %v2012
    %v2093 = vpack.c.b16 %v2017, %v2015
    %v2094 = vpack.c.b16 %v2018, %v2016
    %v2095 = vpack.c.b16 %v2021, %v2019
    %v2096 = vpack.c.b16 %v2022, %v2020
    %v2097 = vpack.c.b16 %v2025, %v2023
    %v2098 = vpack.c.b16 %v2026, %v2024
    %v2099 = vpack.c.b16 %v2029, %v2027
    %v2100 = vpack.c.b16 %v2030, %v2028
    %v2101 = vpack.c.b16 %v2033, %v2031
    %v2102 = vpack.c.b16 %v2034, %v2032
    %v2103 = vpack.c.b16 %v2037, %v2035
    %v2104 = vpack.c.b16 %v2038, %v2036
    %v2105 = vpack.c.b16 %v2041, %v2039
    %v2106 = vpack.c.b16 %v2042, %v2040
    %2171 = vmatprep.subr.bf16.mxu0 %v2044
    %2172 = vmatpush1.bf16.msra.mxu0 %v2043
    %2173 = vmatprep.subr.bf16.mxu0 %v2046
    %2174 = vmatpush1.bf16.msra.mxu0 %v2045
    %2175 = vmatprep.subr.bf16.mxu0 %v2048
    %2176 = vmatpush1.bf16.msra.mxu0 %v2047
    %2177 = vmatprep.subr.bf16.mxu0 %v2050
    %2178 = vmatpush1.bf16.msra.mxu0 %v2049
    %2179 = vmatprep.subr.bf16.mxu0 %v2052
    %2180 = vmatpush1.bf16.msra.mxu0 %v2051
    %2181 = vmatprep.subr.bf16.mxu0 %v2054
    %2182 = vmatpush1.bf16.msra.mxu0 %v2053
    %2183 = vmatprep.subr.bf16.mxu0 %v2056
    %2184 = vmatpush1.bf16.msra.mxu0 %v2055
    %2185 = vmatprep.subr.bf16.mxu0 %v2058
    %2186 = vmatpush1.bf16.msra.mxu0 %v2057
    %2187 = vmatprep.subr.bf16.mxu0 %v2060
    %2188 = vmatpush1.bf16.msra.mxu0 %v2059
    %2189 = vmatprep.subr.bf16.mxu0 %v2062
    %2190 = vmatpush1.bf16.msra.mxu0 %v2061
    %2191 = vmatprep.subr.bf16.mxu0 %v2064
    %2192 = vmatpush1.bf16.msra.mxu0 %v2063
    %2193 = vmatprep.subr.bf16.mxu0 %v2066
    %2194 = vmatpush1.bf16.msra.mxu0 %v2065
    %2195 = vmatprep.subr.bf16.mxu0 %v2068
    %2196 = vmatpush1.bf16.msra.mxu0 %v2067
    %2197 = vmatprep.subr.bf16.mxu0 %v2070
    %2198 = vmatpush1.bf16.msra.mxu0 %v2069
    %2199 = vmatprep.subr.bf16.mxu0 %v2072
    %2200 = vmatpush1.bf16.msra.mxu0 %v2071
    %2201 = vmatprep.subr.bf16.mxu0 %v2074
    %2202 = vmatpush1.bf16.msra.mxu0 %v2073
    %2203 = vmatprep.mubr.bf16.mxu0 %v1772
    %2204 = vmatmul.mubr.bf16.gmra.mrb[0].mxu0 %v1771
    %v2205 = vpop.f32.mrb[0].mxu0
    %v2206 = vadd.f32 %v1844, %v2205
    %v2207 = vpop.f32.mrb[0].mxu0
    %v2208 = vadd.f32 %v1848, %v2207
    %v2209 = vpop.f32.mrb[0].mxu0
    %v2210 = vpop.f32.mrb[0].mxu0
    %2211 = vdwg.mxu0
    %2212 = vmatprep.subr.bf16.mxu0 %v2076
    %2213 = vmatpush1.bf16.msra.mxu0 %v2075
    %2214 = vmatprep.subr.bf16.mxu0 %v2078
    %2215 = vmatpush1.bf16.msra.mxu0 %v2077
    %2216 = vmatprep.subr.bf16.mxu0 %v2080
    %2217 = vmatpush1.bf16.msra.mxu0 %v2079
    %2218 = vmatprep.subr.bf16.mxu0 %v2082
    %2219 = vmatpush1.bf16.msra.mxu0 %v2081
    %2220 = vmatprep.subr.bf16.mxu0 %v2084
    %2221 = vmatpush1.bf16.msra.mxu0 %v2083
    %2222 = vmatprep.subr.bf16.mxu0 %v2086
    %2223 = vmatpush1.bf16.msra.mxu0 %v2085
    %2224 = vmatprep.subr.bf16.mxu0 %v2088
    %2225 = vmatpush1.bf16.msra.mxu0 %v2087
    %2226 = vmatprep.subr.bf16.mxu0 %v2090
    %2227 = vmatpush1.bf16.msra.mxu0 %v2089
    %2228 = vmatprep.subr.bf16.mxu0 %v2092
    %2229 = vmatpush1.bf16.msra.mxu0 %v2091
    %2230 = vmatprep.subr.bf16.mxu0 %v2094
    %2231 = vmatpush1.bf16.msra.mxu0 %v2093
    %2232 = vmatprep.subr.bf16.mxu0 %v2096
    %2233 = vmatpush1.bf16.msra.mxu0 %v2095
    %2234 = vmatprep.subr.bf16.mxu0 %v2098
    %2235 = vmatpush1.bf16.msra.mxu0 %v2097
    %2236 = vmatprep.subr.bf16.mxu0 %v2100
    %2237 = vmatpush1.bf16.msra.mxu0 %v2099
    %2238 = vmatprep.subr.bf16.mxu0 %v2102
    %2239 = vmatpush1.bf16.msra.mxu0 %v2101
    %2240 = vmatprep.subr.bf16.mxu0 %v2104
    %2241 = vmatpush1.bf16.msra.mxu0 %v2103
    %2242 = vmatprep.subr.bf16.mxu0 %v2106
    %2243 = vmatpush1.bf16.msra.mxu0 %v2105
    %2244 = vmatprep.mubr.bf16.mxu0 %v1774
    %2245 = vmatmul.mubr.bf16.gmra.mrb[0].mxu0 %v1773
    %v2246 = vpop.f32.mrb[0].mxu0
    %v2247 = vadd.f32 %v2206, %v2246
    %v2248 = vpop.f32.mrb[0].mxu0
    %v2249 = vadd.f32 %v2208, %v2248
    %v2250 = vpop.f32.mrb[0].mxu0
    %v2251 = vpop.f32.mrb[0].mxu0
    %2252 = vdwg.mxu0
    %vm2253 = vcmp.ge.f32.partialorder %v2247, 0.0
    %vm2254 = vcmp.ge.f32.partialorder %v2249, 0.0
    %v2255 = vmul.f32 %v2247, 0.2
    %v2256 = vmul.f32 %v2249, 0.2
    %v2257 = vsel %vm2253, %v2247, %v2255
    %v2258 = vsel %vm2254, %v2249, %v2256
    %v2259 = vpack.c.bf16 %v2257, %v2257
    %v2260 = vpack.c.bf16 %v2258, %v2258
    %v2261 = vld [vmem:[#allocation12] sm:$0xf]
    %v2262 = vld [vmem:[#allocation12 + $0x4] sm:$0xf]
    %v2263 = vld [vmem:[#allocation12 + $0x8] sm:$0xf]
    %v2264 = vld [vmem:[#allocation12 + $0xc] sm:$0xf]
    %v2265 = vld [vmem:[#allocation12 + $0x10] sm:$0xf]
    %v2266 = vld [vmem:[#allocation12 + $0x14] sm:$0xf]
    %v2267 = vld [vmem:[#allocation12 + $0x18] sm:$0xf]
    %v2268 = vld [vmem:[#allocation12 + $0x1c] sm:$0xf]
    %v2269 = vld [vmem:[#allocation12 + $0x20] sm:$0xf]
    %v2270 = vld [vmem:[#allocation12 + $0x24] sm:$0xf]
    %v2271 = vld [vmem:[#allocation12 + $0x28] sm:$0xf]
    %v2272 = vld [vmem:[#allocation12 + $0x2c] sm:$0xf]
    %v2273 = vld [vmem:[#allocation12 + $0x30] sm:$0xf]
    %v2274 = vld [vmem:[#allocation12 + $0x34] sm:$0xf]
    %v2275 = vld [vmem:[#allocation12 + $0x38] sm:$0xf]
    %v2276 = vld [vmem:[#allocation12 + $0x3c] sm:$0xf]
    %v2277 = vld [vmem:[#allocation12 + $0x40] sm:$0xf]
    %v2278 = vld [vmem:[#allocation12 + $0x44] sm:$0xf]
    %v2279 = vld [vmem:[#allocation12 + $0x48] sm:$0xf]
    %v2280 = vld [vmem:[#allocation12 + $0x4c] sm:$0xf]
    %v2281 = vld [vmem:[#allocation12 + $0x50] sm:$0xf]
    %v2282 = vld [vmem:[#allocation12 + $0x54] sm:$0xf]
    %v2283 = vld [vmem:[#allocation12 + $0x58] sm:$0xf]
    %v2284 = vld [vmem:[#allocation12 + $0x5c] sm:$0xf]
    %v2285 = vld [vmem:[#allocation12 + $0x60] sm:$0xf]
    %v2286 = vld [vmem:[#allocation12 + $0x64] sm:$0xf]
    %v2287 = vld [vmem:[#allocation12 + $0x68] sm:$0xf]
    %v2288 = vld [vmem:[#allocation12 + $0x6c] sm:$0xf]
    %v2289 = vld [vmem:[#allocation12 + $0x70] sm:$0xf]
    %v2290 = vld [vmem:[#allocation12 + $0x74] sm:$0xf]
    %v2291 = vld [vmem:[#allocation12 + $0x78] sm:$0xf]
    %v2292 = vld [vmem:[#allocation12 + $0x7c] sm:$0xf]
    %v2293 = vld [vmem:[%s12] sm:$0x1]
    %v2295 = vlaneseq
    %v2296 = vshrl.u32 %v2295, 7
    %v2297 = vsub.s32 0, %v2296
    %v2298 = vrot.slane %v2293, %v2297
    %v2332 = vunpack.c.l.b16 %v2261
    %v2333 = vunpack.c.l.b16 %v2262
    %v2334 = vunpack.c.l.b16 %v2263
    %v2335 = vunpack.c.l.b16 %v2264
    %v2336 = vunpack.c.l.b16 %v2265
    %v2337 = vunpack.c.l.b16 %v2266
    %v2338 = vunpack.c.l.b16 %v2267
    %v2339 = vunpack.c.l.b16 %v2268
    %v2340 = vunpack.c.l.b16 %v2269
    %v2341 = vunpack.c.l.b16 %v2270
    %v2342 = vunpack.c.l.b16 %v2271
    %v2343 = vunpack.c.l.b16 %v2272
    %v2344 = vunpack.c.l.b16 %v2273
    %v2345 = vunpack.c.l.b16 %v2274
    %v2346 = vunpack.c.l.b16 %v2275
    %v2347 = vunpack.c.l.b16 %v2276
    %v2348 = vunpack.c.l.b16 %v2277
    %v2349 = vunpack.c.l.b16 %v2278
    %v2350 = vunpack.c.l.b16 %v2279
    %v2351 = vunpack.c.l.b16 %v2280
    %v2352 = vunpack.c.l.b16 %v2281
    %v2353 = vunpack.c.l.b16 %v2282
    %v2354 = vunpack.c.l.b16 %v2283
    %v2355 = vunpack.c.l.b16 %v2284
    %v2356 = vunpack.c.l.b16 %v2285
    %v2357 = vunpack.c.l.b16 %v2286
    %v2358 = vunpack.c.l.b16 %v2287
    %v2359 = vunpack.c.l.b16 %v2288
    %v2360 = vunpack.c.l.b16 %v2289
    %v2361 = vunpack.c.l.b16 %v2290
    %v2362 = vunpack.c.l.b16 %v2291
    %v2363 = vunpack.c.l.b16 %v2292
    %v2364 = vpack.c.b16 %v2333, %v2332
    %v2365 = vpack.c.b16 %v2335, %v2334
    %v2366 = vpack.c.b16 %v2337, %v2336
    %v2367 = vpack.c.b16 %v2339, %v2338
    %v2368 = vpack.c.b16 %v2341, %v2340
    %v2369 = vpack.c.b16 %v2343, %v2342
    %v2370 = vpack.c.b16 %v2345, %v2344
    %v2371 = vpack.c.b16 %v2347, %v2346
    %v2372 = vpack.c.b16 %v2349, %v2348
    %v2373 = vpack.c.b16 %v2351, %v2350
    %v2374 = vpack.c.b16 %v2353, %v2352
    %v2375 = vpack.c.b16 %v2355, %v2354
    %v2376 = vpack.c.b16 %v2357, %v2356
    %v2377 = vpack.c.b16 %v2359, %v2358
    %v2378 = vpack.c.b16 %v2361, %v2360
    %v2379 = vpack.c.b16 %v2363, %v2362
    %2396 = vmatprep.subr.bf16.mxu0 0
    %2397 = vmatpush1.bf16.msra.mxu0 %v2364
    %2398 = vmatprep.subr.bf16.mxu0 0
    %2399 = vmatpush1.bf16.msra.mxu0 %v2365
    %2400 = vmatprep.subr.bf16.mxu0 0
    %2401 = vmatpush1.bf16.msra.mxu0 %v2366
    %2402 = vmatprep.subr.bf16.mxu0 0
    %2403 = vmatpush1.bf16.msra.mxu0 %v2367
    %2404 = vmatprep.subr.bf16.mxu0 0
    %2405 = vmatpush1.bf16.msra.mxu0 %v2368
    %2406 = vmatprep.subr.bf16.mxu0 0
    %2407 = vmatpush1.bf16.msra.mxu0 %v2369
    %2408 = vmatprep.subr.bf16.mxu0 0
    %2409 = vmatpush1.bf16.msra.mxu0 %v2370
    %2410 = vmatprep.subr.bf16.mxu0 0
    %2411 = vmatpush1.bf16.msra.mxu0 %v2371
    %2412 = vmatprep.subr.bf16.mxu0 0
    %2413 = vmatpush1.bf16.msra.mxu0 %v2372
    %2414 = vmatprep.subr.bf16.mxu0 0
    %2415 = vmatpush1.bf16.msra.mxu0 %v2373
    %2416 = vmatprep.subr.bf16.mxu0 0
    %2417 = vmatpush1.bf16.msra.mxu0 %v2374
    %2418 = vmatprep.subr.bf16.mxu0 0
    %2419 = vmatpush1.bf16.msra.mxu0 %v2375
    %2420 = vmatprep.subr.bf16.mxu0 0
    %2421 = vmatpush1.bf16.msra.mxu0 %v2376
    %2422 = vmatprep.subr.bf16.mxu0 0
    %2423 = vmatpush1.bf16.msra.mxu0 %v2377
    %2424 = vmatprep.subr.bf16.mxu0 0
    %2425 = vmatpush1.bf16.msra.mxu0 %v2378
    %2426 = vmatprep.subr.bf16.mxu0 0
    %2427 = vmatpush1.bf16.msra.mxu0 %v2379
    %2428 = vmatprep.mubr.bf16.mxu0 %v2260
    %2429 = vmatmul.mubr.bf16.gmra.mrb[0].mxu0 %v2259
    %v2430 = vpop.f32.mrb[0].mxu0
    %v2431 = vadd.f32 %v2298, %v2430
    %v2432 = vpop.f32.mrb[0].mxu0
    %v2433 = vpop.f32.mrb[0].mxu0
    %v2434 = vpop.f32.mrb[0].mxu0
    %2435 = vdwg.mxu0
    %v2436 = vsub.f32 0.0, %v2431
    %v2437 = vmul.f32 %v2436, 1.442695
    %v2438 = vpow.pop %v2437
    %v2439 = vadd.f32 %v2438, 1.0
    %v2440 = vrcp.pop %v2439
    %v2441 = vmax.f32 %v2440, 0.0
    %v2442 = vmin.f32 %v2441, 1.0
    %2443 = vst [vmem:[%s13] sm:$0x3] %v2442
    // Predicated region
    $region82: #{gan_forward.1} parent=1 // pred_check
      _
    $region83: #{gan_forward.1} parent=1 // pred_check_branch
      %2445 = sbr.rel (0) target = $region85
    $region84: #{gan_forward.1} parent=1 // pred_region
      _
    $region85: #{gan_forward.1} parent=1 // pred_fallthru
      _
    // Predicated region
    $region86: #{gan_forward.1} parent=1 // pred_check
      _
    $region87: #{gan_forward.1} parent=1 // pred_check_branch
      %2447 = sbr.rel (0) target = $region89
    $region88: #{gan_forward.1} parent=1 // pred_region
      _
    $region89: #{gan_forward.1} parent=1 // pred_fallthru
      _
    %2448 = vsyncpa [#allocation3], 1
    %2449 = vsyncpa [#allocation5], 1
    %2450 = vsyncpa [#allocation8], 1
    %2451 = vsyncpa [#allocation11], 1

</llo_original>
